<compile_context>
chip_gen: v5e
topology: v5e:2x2
jax: 0.10.0
libtpu: 0.0.40
codegen_flags: <defaults>
</compile_context>

<pallas_src>
import jax
import jax.numpy as jnp
from jax.experimental import pallas as pl
from jax.experimental.pallas import tpu as pltpu


def _fused_kernel(x_ref, w_ref, gamma_ref, beta_ref, o_ref):
    # relu45 (inplace ReLU on the input)
    x = jnp.maximum(x_ref[...], 0.0)

    # conv2d49: Conv2d(1344, 1344, kernel_size=1, stride=1, bias=False)
    #   == matmul over the channel dim (weight pre-transposed to (Cin, TN)).
    # Kept in f32 to match the PyTorch module's numerics; casting x/w to bf16 here
    # (with f32 accumulation) would roughly quarter MXU time on v5e/v7x if the
    # accuracy budget allows.
    y = jnp.dot(x, w_ref[...], preferred_element_type=jnp.float32)

    # batchnorm2d49: default PyTorch module is in training mode, so the forward
    # normalizes with batch statistics over (N, H, W) per channel (biased variance).
    # Single-pass stats + affine folded into one multiply-add per element.
    p_rows = y.shape[0]              # = full P (the P axis is never tiled)
    inv_p = 1.0 / p_rows
    s = jnp.sum(y, axis=0, keepdims=True)
    ss = jnp.sum(y * y, axis=0, keepdims=True)
    mean = s * inv_p
    var = ss * inv_p - mean * mean
    scale = gamma_ref[...] * jax.lax.rsqrt(var + 1e-5)
    shift = beta_ref[...] - mean * scale

    # relu46
    o_ref[...] = jnp.maximum(y * scale + shift, 0.0)
    # TODO(synk): running_mean/running_var update (momentum=0.1) is a training-time
    # buffer side effect, not part of the returned tensor; omitted.


def relu_conv_bn_relu(x_nchw, w_oi, gamma, beta, *, tn=128):
    N, C, H, W = x_nchw.shape
    Cout, Cin = w_oi.shape
    assert Cin == C
    P = N * H * W

    # glue: layout + parameter reshapes (plain JAX)
    x2d = jnp.transpose(x_nchw, (0, 2, 3, 1)).reshape(P, Cin)   # (P, Cin)
    w2d = jnp.transpose(w_oi, (1, 0))                           # (Cin, Cout)
    g2d = gamma.reshape(1, Cout)
    b2d = beta.reshape(1, Cout)

    grid = (pl.cdiv(Cout, tn),)  # tile over output channels; last block ragged/masked

    out2d = pl.pallas_call(
        _fused_kernel,
        out_shape=jax.ShapeDtypeStruct((P, Cout), jnp.float32),
        grid=grid,
        in_specs=[
            # activations (~1 MiB): constant block index -> fetched once, stays resident
            pl.BlockSpec((P, Cin), lambda j: (0, 0)),
            # weight slab (Cin, TN) ~0.7 MiB: double-buffered behind the MXU matmul
            pl.BlockSpec((Cin, tn), lambda j: (0, j)),
            pl.BlockSpec((1, tn), lambda j: (0, j)),   # gamma tile
            pl.BlockSpec((1, tn), lambda j: (0, j)),   # beta tile
        ],
        out_specs=pl.BlockSpec((P, tn), lambda j: (0, j)),
        compiler_params=pltpu.CompilerParams(
            # Cout tiles are independent -> shard across TensorCores on v7x.
            dimension_semantics=("parallel",),
            # default scoped VMEM limit is plenty (~3 MiB working set); no override.
        ),
    )(x2d, w2d, g2d, b2d)

    # back to NCHW to match the PyTorch module's convention
    return jnp.transpose(out2d.reshape(N, H, W, Cout), (0, 3, 1, 2))


def _reference(x_nchw, w_oi, gamma, beta):
    # Pure-JAX reference of the module's forward (training-mode BN, biased variance).
    x = jnp.maximum(x_nchw, 0.0)
    N, C, H, W = x.shape
    x2d = jnp.transpose(x, (0, 2, 3, 1)).reshape(N * H * W, C)
    y = jnp.dot(x2d, w_oi.T)
    mean = jnp.mean(y, axis=0, keepdims=True)
    var = jnp.mean(jnp.square(y - mean), axis=0, keepdims=True)
    z = (y - mean) * jax.lax.rsqrt(var + 1e-5) * gamma.reshape(1, -1) + beta.reshape(1, -1)
    z = jnp.maximum(z, 0.0)
    return jnp.transpose(z.reshape(N, H, W, C), (0, 3, 1, 2))


if __name__ == "__main__":
    key = jax.random.PRNGKey(0)
    k1, k2, k3, k4 = jax.random.split(key, 4)

    # shapes implied by the module: 1x1 conv with 1344 in/out channels, 14x14 spatial
    N, C, H, W = 1, 1344, 14, 14
    x = jax.random.normal(k1, (N, C, H, W), dtype=jnp.float32)

    # deterministic synthetic parameters (shapes from module __init__)
    w = 0.02 * jax.random.normal(k2, (C, C), dtype=jnp.float32)        # conv2d49.weight (Cout, Cin, 1, 1) -> (Cout, Cin)
    gamma = 1.0 + 0.1 * jax.random.normal(k3, (C,), dtype=jnp.float32)  # batchnorm2d49.weight
    beta = 0.1 * jax.random.normal(k4, (C,), dtype=jnp.float32)         # batchnorm2d49.bias

    out = relu_conv_bn_relu(x, w, gamma, beta)
    jax.block_until_ready(out)
    assert out.shape == (N, C, H, W) and out.dtype == jnp.float32
    assert bool(jnp.all(jnp.isfinite(out)))

    ref = _reference(x, w, gamma, beta)
    assert bool(jnp.allclose(out, ref, rtol=2e-2, atol=2e-2))

    print("KERNEL_OK")
</pallas_src>

<mosaic_0001>
module attributes {stable_mosaic.version = 11 : i64} {
  func.func @_fused_kernel(%arg0: i32, %arg1: memref<196x1344xf32, #tpu.memory_space<vmem>>, %arg2: memref<1344x128xf32, #tpu.memory_space<vmem>>, %arg3: memref<1x128xf32, #tpu.memory_space<vmem>>, %arg4: memref<1x128xf32, #tpu.memory_space<vmem>>, %arg5: memref<196x128xf32, #tpu.memory_space<vmem>>) attributes {dimension_semantics = [#tpu.dimension_semantics<parallel>], iteration_bounds = array<i64: 11>, scalar_prefetch = 0 : i64, scratch_operands = 0 : i64, tpu.core_type = #tpu.core_type<tc>, window_params = [{pipeline_mode = #tpu.pipeline_mode<synchronous>, transform_indices = @transform_0, window_bounds = array<i64: 196, 1344>}, {transform_indices = @transform_1, window_bounds = array<i64: 1344, 128>}, {transform_indices = @transform_2, window_bounds = array<i64: 1, 128>}, {transform_indices = @transform_3, window_bounds = array<i64: 1, 128>}, {transform_indices = @transform_4, window_bounds = array<i64: 196, 128>}]} {
    %c0 = arith.constant 0 : index
    %c0_0 = arith.constant 0 : index
    %0 = vector.load %arg1[%c0, %c0_0] : memref<196x1344xf32, #tpu.memory_space<vmem>>, vector<196x1344xf32>
    %cst = arith.constant 0.000000e+00 : f32
    %1 = vector.broadcast %cst : f32 to vector<196x1344xf32>
    %2 = arith.maximumf %0, %1 : vector<196x1344xf32>
    %c0_1 = arith.constant 0 : index
    %c0_2 = arith.constant 0 : index
    %3 = vector.load %arg2[%c0_1, %c0_2] : memref<1344x128xf32, #tpu.memory_space<vmem>>, vector<1344x128xf32>
    %cst_3 = arith.constant dense<0.000000e+00> : vector<196x128xf32>
    %4 = tpu.matmul %2, %3, %cst_3 {dimension_numbers = #tpu.dot_dimension_numbers<[1], [0], [0], [1], [0, 0, 1, 1], [], []>} : vector<196x1344xf32>, vector<1344x128xf32>, vector<196x128xf32> -> vector<196x128xf32>
    %cst_4 = arith.constant dense<0.000000e+00> : vector<128xf32>
    %5 = vector.multi_reduction <add>, %4, %cst_4 [0] : vector<196x128xf32> to vector<128xf32>
    %6 = vector.shape_cast %5 : vector<128xf32> to vector<1x128xf32>
    %7 = arith.mulf %4, %4 : vector<196x128xf32>
    %cst_5 = arith.constant dense<0.000000e+00> : vector<128xf32>
    %8 = vector.multi_reduction <add>, %7, %cst_5 [0] : vector<196x128xf32> to vector<128xf32>
    %9 = vector.shape_cast %8 : vector<128xf32> to vector<1x128xf32>
    %cst_6 = arith.constant 0.00510204071 : f32
    %10 = vector.broadcast %cst_6 : f32 to vector<1x128xf32>
    %11 = arith.mulf %6, %10 : vector<1x128xf32>
    %cst_7 = arith.constant 0.00510204071 : f32
    %12 = vector.broadcast %cst_7 : f32 to vector<1x128xf32>
    %13 = arith.mulf %9, %12 : vector<1x128xf32>
    %14 = arith.mulf %11, %11 : vector<1x128xf32>
    %15 = arith.subf %13, %14 : vector<1x128xf32>
    %c0_8 = arith.constant 0 : index
    %c0_9 = arith.constant 0 : index
    %16 = vector.load %arg3[%c0_8, %c0_9] : memref<1x128xf32, #tpu.memory_space<vmem>>, vector<1x128xf32>
    %cst_10 = arith.constant 9.99999974E-6 : f32
    %17 = vector.broadcast %cst_10 : f32 to vector<1x128xf32>
    %18 = arith.addf %15, %17 : vector<1x128xf32>
    %19 = math.rsqrt %18 : vector<1x128xf32>
    %20 = arith.mulf %16, %19 : vector<1x128xf32>
    %c0_11 = arith.constant 0 : index
    %c0_12 = arith.constant 0 : index
    %21 = vector.load %arg4[%c0_11, %c0_12] : memref<1x128xf32, #tpu.memory_space<vmem>>, vector<1x128xf32>
    %22 = arith.mulf %11, %20 : vector<1x128xf32>
    %23 = arith.subf %21, %22 : vector<1x128xf32>
    %24 = vector.broadcast %20 : vector<1x128xf32> to vector<196x128xf32>
    %25 = arith.mulf %4, %24 : vector<196x128xf32>
    %26 = vector.broadcast %23 : vector<1x128xf32> to vector<196x128xf32>
    %27 = arith.addf %25, %26 : vector<196x128xf32>
    %cst_13 = arith.constant 0.000000e+00 : f32
    %28 = vector.broadcast %cst_13 : f32 to vector<196x128xf32>
    %29 = arith.maximumf %27, %28 : vector<196x128xf32>
    %c0_14 = arith.constant 0 : index
    %c0_15 = arith.constant 0 : index
    %30 = vector.load %arg5[%c0_14, %c0_15] : memref<196x128xf32, #tpu.memory_space<vmem>>, vector<196x128xf32>
    tpu.vector_store %arg5[%c0_14, %c0_15], %29 {strides = array<i32>} : memref<196x128xf32, #tpu.memory_space<vmem>>, vector<196x128xf32>,
    return
  }
  func.func @transform_0(%arg0: i32) -> (i32, i32) {
    %c0_i32 = arith.constant 0 : i32
    %c0_i32_0 = arith.constant 0 : i32
    %c0_i32_1 = arith.constant 0 : i32
    return %c0_i32, %c0_i32_0 : i32, i32
  }
  func.func @transform_1(%arg0: i32) -> (i32, i32) {
    %c0_i32 = arith.constant 0 : i32
    %c0_i32_0 = arith.constant 0 : i32
    return %c0_i32, %arg0 : i32, i32
  }
  func.func @transform_2(%arg0: i32) -> (i32, i32) {
    %c0_i32 = arith.constant 0 : i32
    %c0_i32_0 = arith.constant 0 : i32
    return %c0_i32, %arg0 : i32, i32
  }
  func.func @transform_3(%arg0: i32) -> (i32, i32) {
    %c0_i32 = arith.constant 0 : i32
    %c0_i32_0 = arith.constant 0 : i32
    return %c0_i32, %arg0 : i32, i32
  }
  func.func @transform_4(%arg0: i32) -> (i32, i32) {
    %c0_i32 = arith.constant 0 : i32
    %c0_i32_0 = arith.constant 0 : i32
    return %c0_i32, %arg0 : i32, i32
  }
}

</mosaic_0001>

<llo_original>
// kernel: tpu_custom_call.1
$region0: #{tpu_custom_call.1}
  #allocation0 [shape = 'u32[]', space=smem, size = 0x4, offset = 0x4, fixed_abs, tag = 'smem constant byte address 0x4 - core index']
  #allocation1 [shape = 'u32[72,128]{1,0:T(1,128)}', space=vmem, size = 0x9000, scoped, tag = 'internal scratch']
  %s0 = inlined_call_operand.hbm [shape: f32[196,1344], index: 0, kind: input, shape index: {}]
  %s1 = inlined_call_operand.hbm [shape: f32[1344,1344], index: 1, kind: input, shape index: {}]
  %s2 = inlined_call_operand.hbm [shape: f32[1,1344], index: 2, kind: input, shape index: {}]
  %s3 = inlined_call_operand.hbm [shape: f32[1,1344], index: 3, kind: input, shape index: {}]
  %s4 = inlined_call_operand.hbm [shape: f32[196,1344], index: 4, kind: output, shape index: {}]
  %s5 = sld [smem:[#allocation0]]
  $region65: #{tpu_custom_call.1} parent=0
    _
  %s7 = ssub.s32 1, %s5
  %s8 = scalar_select 0, %s7, %s5
  $region1: #{tpu_custom_call.1} parent=0
    #allocation2 [shape = 'u8[1126400]{0}', space=vmem, size = 0x113000, scoped, tag = 'input window, operand 0, single buffered']
    #allocation3 [shape = 's32[2]{0}', space=sflag, size = 0x8, scoped, tag = 'scoped memory for tpu_custom_call.1']
    #allocation4 [shape = 's32[2]{0}', space=sflag, size = 0x8, scoped, tag = 'scoped memory for tpu_custom_call.1']
    #allocation5 [shape = 'u8[1376256]{0}', space=vmem, size = 0x150000, scoped, tag = 'input window, operand 1']
    #allocation6 [shape = 's32[2]{0}', space=sflag, size = 0x8, scoped, tag = 'scoped memory for tpu_custom_call.1']
    #allocation7 [shape = 'u8[1024]{0}', space=vmem, size = 0x400, scoped, tag = 'input window, operand 2']
    #allocation8 [shape = 'u8[1024]{0}', space=vmem, size = 0x400, scoped, tag = 'input window, operand 3']
    #allocation9 [shape = 's32[2]{0}', space=sflag, size = 0x8, scoped, tag = 'scoped memory for tpu_custom_call.1']
    #allocation10 [shape = 'u8[204800]{0}', space=vmem, size = 0x32000, scoped, tag = 'output window, operand 0']
    %9 = vsyncpa [#allocation3], 0
    %10 = vsyncpa [#allocation6], 0
    %s11 = scalar_lea.sflag [#allocation6], 1
    %12 = vsyncpa %s11, 0
    %13 = vsyncpa [#allocation9], 0
    %s14 = scalar_lea.sflag [#allocation9], 1
    %15 = vsyncpa %s14, 0
    %16 = vsyncpa [#allocation4], 0
    %s17 = scalar_lea.sflag [#allocation4], 1
    %18 = vsyncpa %s17, 0
    loop: start=0, step=1, limit=13
    $region2: #{tpu_custom_call.1} parent=1 // loop_pre_header
      _
    $region3: #{tpu_custom_call.1} parent=1 // loop_header
      %s20 = sphi 0, %s24
      %p21 = scmp.ge.s32.totalorder %s20, 13
      %s28 = sphi 0, %s28
      %s30 = sphi 0, %s28
      %s31 = sphi 0, %s30
      %s45 = sphi 0, %s31
      %s51 = sphi 0, %s53
      %s54 = sphi 0, %s51
      %s55 = sphi 0, %s54
      %s71 = sphi 0, %s55
      %s77 = sphi 0, %s79
      %s80 = sphi 0, %s77
      %s81 = sphi 0, %s80
      %s97 = sphi 0, %s81
      %s103 = sphi 0, %s105
      %s106 = sphi 0, %s103
      %s107 = sphi 0, %s106
      %s123 = sphi 0, %s107
      %s129 = sphi 0, %s131
      %s132 = sphi 0, %s129
      %s133 = sphi 0, %s132
      %s149 = sphi 0, %s133
    $region4: #{tpu_custom_call.1} parent=1 // loop_header_branch
      %23 = sbr.rel (%p21) target = $region8
    $region5: #{tpu_custom_call.1} parent=1 // loop_body
      %s25 = ssub.s32 %s20, 1
      %s26 = ssub.s32 %s20, 2
      %s27 = sadd.s32 %s20, 1
      %s29 = sadd.s32 %s28, 1
      %p32 = scmp.eq.s32.totalorder %s20, 10
      %p33 = scmp.ne.s32.totalorder %s28, %s30
      %p34 = scmp.eq.s32.totalorder %s20, 0
      %p35 = por %p33, %p34
      %p36 = scmp.ne.s32.totalorder %s28, %s30
      %p37 = scmp.eq.s32.totalorder %s25, 10
      %p38 = por %p36, %p37
      %p39 = scmp.ne.s32.totalorder %s30, %s31
      %p40 = scmp.eq.s32.totalorder %s25, 0
      %p41 = por %p39, %p40
      %p42 = scmp.ne.s32.totalorder %s30, %s31
      %p43 = scmp.eq.s32.totalorder %s26, 10
      %p44 = por %p42, %p43
      %p46 = scmp.ne.s32.totalorder %s31, %s45
      %p47 = scmp.eq.s32.totalorder %s26, 0
      %p48 = por %p46, %p47
      %s49 = ssub.s32 %s20, %s27
      %p50 = scmp.eq.s32.totalorder %s49, 0
      %s52 = sadd.s32 %s51, 1
      %s53 = scalar_select %p50, %s51, %s52
      %p56 = pneg %p50
      %p57 = scmp.eq.s32.totalorder %s20, 10
      %p58 = por %p56, %p57
      %p59 = scmp.ne.s32.totalorder %s51, %s54
      %p60 = scmp.eq.s32.totalorder %s20, 0
      %p61 = por %p59, %p60
      %p62 = scmp.ne.s32.totalorder %s51, %s54
      %p63 = scmp.eq.s32.totalorder %s25, 10
      %p64 = por %p62, %p63
      %p65 = scmp.ne.s32.totalorder %s54, %s55
      %p66 = scmp.eq.s32.totalorder %s25, 0
      %p67 = por %p65, %p66
      %p68 = scmp.ne.s32.totalorder %s54, %s55
      %p69 = scmp.eq.s32.totalorder %s26, 10
      %p70 = por %p68, %p69
      %p72 = scmp.ne.s32.totalorder %s55, %s71
      %p73 = scmp.eq.s32.totalorder %s26, 0
      %p74 = por %p72, %p73
      %s75 = ssub.s32 %s20, %s27
      %p76 = scmp.eq.s32.totalorder %s75, 0
      %s78 = sadd.s32 %s77, 1
      %s79 = scalar_select %p76, %s77, %s78
      %p82 = pneg %p76
      %p83 = scmp.eq.s32.totalorder %s20, 10
      %p84 = por %p82, %p83
      %p85 = scmp.ne.s32.totalorder %s77, %s80
      %p86 = scmp.eq.s32.totalorder %s20, 0
      %p87 = por %p85, %p86
      %p88 = scmp.ne.s32.totalorder %s77, %s80
      %p89 = scmp.eq.s32.totalorder %s25, 10
      %p90 = por %p88, %p89
      %p91 = scmp.ne.s32.totalorder %s80, %s81
      %p92 = scmp.eq.s32.totalorder %s25, 0
      %p93 = por %p91, %p92
      %p94 = scmp.ne.s32.totalorder %s80, %s81
      %p95 = scmp.eq.s32.totalorder %s26, 10
      %p96 = por %p94, %p95
      %p98 = scmp.ne.s32.totalorder %s81, %s97
      %p99 = scmp.eq.s32.totalorder %s26, 0
      %p100 = por %p98, %p99
      %s101 = ssub.s32 %s20, %s27
      %p102 = scmp.eq.s32.totalorder %s101, 0
      %s104 = sadd.s32 %s103, 1
      %s105 = scalar_select %p102, %s103, %s104
      %p108 = pneg %p102
      %p109 = scmp.eq.s32.totalorder %s20, 10
      %p110 = por %p108, %p109
      %p111 = scmp.ne.s32.totalorder %s103, %s106
      %p112 = scmp.eq.s32.totalorder %s20, 0
      %p113 = por %p111, %p112
      %p114 = scmp.ne.s32.totalorder %s103, %s106
      %p115 = scmp.eq.s32.totalorder %s25, 10
      %p116 = por %p114, %p115
      %p117 = scmp.ne.s32.totalorder %s106, %s107
      %p118 = scmp.eq.s32.totalorder %s25, 0
      %p119 = por %p117, %p118
      %p120 = scmp.ne.s32.totalorder %s106, %s107
      %p121 = scmp.eq.s32.totalorder %s26, 10
      %p122 = por %p120, %p121
      %p124 = scmp.ne.s32.totalorder %s107, %s123
      %p125 = scmp.eq.s32.totalorder %s26, 0
      %p126 = por %p124, %p125
      %s127 = ssub.s32 %s20, %s27
      %p128 = scmp.eq.s32.totalorder %s127, 0
      %s130 = sadd.s32 %s129, 1
      %s131 = scalar_select %p128, %s129, %s130
      %p134 = pneg %p128
      %p135 = scmp.eq.s32.totalorder %s20, 10
      %p136 = por %p134, %p135
      %p137 = scmp.ne.s32.totalorder %s129, %s132
      %p138 = scmp.eq.s32.totalorder %s20, 0
      %p139 = por %p137, %p138
      %p140 = scmp.ne.s32.totalorder %s129, %s132
      %p141 = scmp.eq.s32.totalorder %s25, 10
      %p142 = por %p140, %p141
      %p143 = scmp.ne.s32.totalorder %s132, %s133
      %p144 = scmp.eq.s32.totalorder %s25, 0
      %p145 = por %p143, %p144
      %p146 = scmp.ne.s32.totalorder %s132, %s133
      %p147 = scmp.eq.s32.totalorder %s26, 10
      %p148 = por %p146, %p147
      %p150 = scmp.ne.s32.totalorder %s133, %s149
      %p151 = scmp.eq.s32.totalorder %s26, 0
      %p152 = por %p150, %p151
      %p153 = scmp.le.s32.totalorder 1, %s20
      %p154 = scmp.lt.s32.totalorder %s20, 12
      %p155 = pnand %p153, %p154
      %p156 = pneg %p155
      // Predicated region
      $region9: #{tpu_custom_call.1} parent=5 // pred_check
        _
      $region10: #{tpu_custom_call.1} parent=5 // pred_check_branch
        %158 = sbr.rel (%p155) target = $region12
      $region11: #{tpu_custom_call.1} parent=5 // pred_region
        %s159 = ssub.s32 %s20, 1
        // Predicated region
        $region13: #{tpu_custom_call.1} parent=11 // pred_check
          %p160 = pneg %p41
        $region14: #{tpu_custom_call.1} parent=11 // pred_check_branch
          %162 = sbr.rel (%p160) target = $region16
        $region15: #{tpu_custom_call.1} parent=11 // pred_region
          %164 = vsyncadd [#allocation3], 0
          %s165 = sshll.u32 %s0, 4
          %s166 = int_to_ptr.hbm [resolvable:$true] %s165
          %s167 = sshll.u32 [#allocation2], 4
          %s168 = int_to_ptr.vmem [resolvable:$true] %s167
          %173 = dma.hbm_to_vmem [thread:$0]  %s166, 35200, %s168, [#allocation3], 1408, 1408, 88
        $region16: #{tpu_custom_call.1} parent=11 // pred_fallthru
          _
      $region12: #{tpu_custom_call.1} parent=5 // pred_fallthru
        _
      %p174 = scmp.lt.s32.totalorder %s20, 11
      // Predicated region
      $region17: #{tpu_custom_call.1} parent=5 // pred_check
        %p175 = pneg %p174
      $region18: #{tpu_custom_call.1} parent=5 // pred_check_branch
        %177 = sbr.rel (%p175) target = $region20
      $region19: #{tpu_custom_call.1} parent=5 // pred_region
        // Predicated region
        $region21: #{tpu_custom_call.1} parent=19 // pred_check
          %p178 = pneg %p61
        $region22: #{tpu_custom_call.1} parent=19 // pred_check_branch
          %180 = sbr.rel (%p178) target = $region24
        $region23: #{tpu_custom_call.1} parent=19 // pred_region
          %s181 = sand.u32 %s20, 1
          %s182 = scalar_lea.sflag [#allocation6], %s181
          %s183 = sand.u32 %s51, 1
          %s184 = smul.addr %s183, 1344
          %s185 = scalar_lea.vmem [#allocation5], %s184
          %187 = vsyncadd %s182, 0
          %s188 = smul.addr %s20, 8
          %s189 = scalar_lea.hbm %s1, %s188
          %s190 = sshll.u32 %s189, 4
          %s191 = int_to_ptr.hbm [resolvable:$true] %s190
          %s192 = sshll.u32 %s185, 4
          %s193 = int_to_ptr.vmem [resolvable:$true] %s192
          %198 = dma.hbm_to_vmem [thread:$0]  %s191, 21504, %s193, %s182, 1408, 128, 8
        $region24: #{tpu_custom_call.1} parent=19 // pred_fallthru
          _
        // Predicated region
        $region25: #{tpu_custom_call.1} parent=19 // pred_check
          %p199 = pneg %p87
        $region26: #{tpu_custom_call.1} parent=19 // pred_check_branch
          %201 = sbr.rel (%p199) target = $region28
        $region27: #{tpu_custom_call.1} parent=19 // pred_region
          %s202 = sand.u32 %s20, 1
          %s203 = scalar_lea.sflag [#allocation6], %s202
          %s204 = sand.u32 %s77, 1
          %s205 = scalar_lea.vmem [#allocation7], %s204
          %207 = vsyncadd %s203, 0
          %s208 = scalar_lea.hbm %s2, %s20
          %s210 = sshll.u32 %s208, 4
          %s211 = int_to_ptr.hbm [resolvable:$true] %s210
          %s212 = sshll.u32 %s205, 4
          %s213 = int_to_ptr.vmem [resolvable:$true] %s212
          %215 = dma.hbm_to_vmem [thread:$0]  %s211, 16, %s213, %s203
        $region28: #{tpu_custom_call.1} parent=19 // pred_fallthru
          _
        // Predicated region
        $region29: #{tpu_custom_call.1} parent=19 // pred_check
          %p216 = pneg %p113
        $region30: #{tpu_custom_call.1} parent=19 // pred_check_branch
          %218 = sbr.rel (%p216) target = $region32
        $region31: #{tpu_custom_call.1} parent=19 // pred_region
          %s219 = sand.u32 %s103, 1
          %s220 = scalar_lea.sflag [#allocation9], %s219
          %s221 = sand.u32 %s103, 1
          %s222 = scalar_lea.vmem [#allocation8], %s221
          %224 = vsyncadd %s220, 0
          %s225 = scalar_lea.hbm %s3, %s20
          %s227 = sshll.u32 %s225, 4
          %s228 = int_to_ptr.hbm [resolvable:$true] %s227
          %s229 = sshll.u32 %s222, 4
          %s230 = int_to_ptr.vmem [resolvable:$true] %s229
          %232 = dma.hbm_to_vmem [thread:$0]  %s228, 16, %s230, %s220
        $region32: #{tpu_custom_call.1} parent=19 // pred_fallthru
          _
      $region20: #{tpu_custom_call.1} parent=5 // pred_fallthru
        _
      %p233 = scmp.le.s32.totalorder 1, %s20
      %p234 = scmp.lt.s32.totalorder %s20, 12
      %p235 = pnand %p233, %p234
      %p236 = pneg %p235
      // Predicated region
      $region33: #{tpu_custom_call.1} parent=5 // pred_check
        _
      $region34: #{tpu_custom_call.1} parent=5 // pred_check_branch
        %238 = sbr.rel (%p235) target = $region36
      $region35: #{tpu_custom_call.1} parent=5 // pred_region
        %s239 = ssub.s32 %s20, 1
        // Predicated region
        $region37: #{tpu_custom_call.1} parent=35 // pred_check
          %p240 = pneg %p41
        $region38: #{tpu_custom_call.1} parent=35 // pred_check_branch
          %242 = sbr.rel (%p240) target = $region40
        $region39: #{tpu_custom_call.1} parent=35 // pred_region
          %244 = dma.done [#allocation3], 35200
        $region40: #{tpu_custom_call.1} parent=35 // pred_fallthru
          _
        %s245 = sand.u32 %s25, 1
        %s246 = scalar_lea.sflag [#allocation6], %s245
        %s247 = sand.u32 %s54, 1
        %s248 = smul.addr %s247, 1344
        %s249 = scalar_lea.vmem [#allocation5], %s248
        // Predicated region
        $region41: #{tpu_custom_call.1} parent=35 // pred_check
          %p250 = pneg %p67
        $region42: #{tpu_custom_call.1} parent=35 // pred_check_branch
          %252 = sbr.rel (%p250) target = $region44
        $region43: #{tpu_custom_call.1} parent=35 // pred_region
          %254 = dma.done %s246, 21504
        $region44: #{tpu_custom_call.1} parent=35 // pred_fallthru
          _
        %s255 = sand.u32 %s25, 1
        %s256 = scalar_lea.sflag [#allocation6], %s255
        %s257 = sand.u32 %s80, 1
        %s258 = scalar_lea.vmem [#allocation7], %s257
        // Predicated region
        $region45: #{tpu_custom_call.1} parent=35 // pred_check
          %p259 = pneg %p93
        $region46: #{tpu_custom_call.1} parent=35 // pred_check_branch
          %261 = sbr.rel (%p259) target = $region48
        $region47: #{tpu_custom_call.1} parent=35 // pred_region
          %263 = dma.done %s256, 16
        $region48: #{tpu_custom_call.1} parent=35 // pred_fallthru
          _
        %s264 = sand.u32 %s106, 1
        %s265 = scalar_lea.sflag [#allocation9], %s264
        %s266 = sand.u32 %s106, 1
        %s267 = scalar_lea.vmem [#allocation8], %s266
        // Predicated region
        $region49: #{tpu_custom_call.1} parent=35 // pred_check
          %p268 = pneg %p119
        $region50: #{tpu_custom_call.1} parent=35 // pred_check_branch
          %270 = sbr.rel (%p268) target = $region52
        $region51: #{tpu_custom_call.1} parent=35 // pred_region
          %272 = dma.done %s265, 16
        $region52: #{tpu_custom_call.1} parent=35 // pred_fallthru
          _
        %p273 = pneg %p41
        %p274 = pneg %p38
        %s275 = sand.u32 %s25, 1
        %s276 = scalar_lea.sflag [#allocation6], %s275
        %s277 = sand.u32 %s54, 1
        %s278 = smul.addr %s277, 1344
        %s279 = scalar_lea.vmem [#allocation5], %s278
        %p280 = pneg %p67
        %p281 = pneg %p64
        %s282 = sand.u32 %s25, 1
        %s283 = scalar_lea.sflag [#allocation6], %s282
        %s284 = sand.u32 %s80, 1
        %s285 = scalar_lea.vmem [#allocation7], %s284
        %p286 = pneg %p93
        %p287 = pneg %p90
        %s288 = sand.u32 %s106, 1
        %s289 = scalar_lea.sflag [#allocation9], %s288
        %s290 = sand.u32 %s106, 1
        %s291 = scalar_lea.vmem [#allocation8], %s290
        %p292 = pneg %p119
        %p293 = pneg %p116
        %p294 = pneg %p145
        %p295 = pneg %p142
        %s296 = sand.u32 %s132, 1
        %s297 = scalar_lea.sflag [#allocation4], %s296
        %s298 = sand.u32 %s132, 1
        %s299 = smul.addr %s298, 200
        %s300 = scalar_lea.vmem [#allocation10], %s299
        %v301 = vld [vmem:[#allocation2] sm:$0xff]
        %v302 = vld [vmem:[#allocation2 + $0x8] sm:$0xff]
        %v303 = vld [vmem:[#allocation2 + $0x10] sm:$0xff]
        %v304 = vld [vmem:[#allocation2 + $0x18] sm:$0xff]
        %v305 = vld [vmem:[#allocation2 + $0x20] sm:$0xff]
        %v306 = vld [vmem:[#allocation2 + $0x28] sm:$0xff]
        %v307 = vld [vmem:[#allocation2 + $0x30] sm:$0xff]
        %v308 = vld [vmem:[#allocation2 + $0x38] sm:$0xff]
        %v309 = vld [vmem:[#allocation2 + $0x40] sm:$0xff]
        %v310 = vld [vmem:[#allocation2 + $0x48] sm:$0xff]
        %v311 = vld [vmem:[#allocation2 + $0x50] sm:$0xff]
        %v312 = vld [vmem:[#allocation2 + $0x58] sm:$0xff]
        %v313 = vld [vmem:[#allocation2 + $0x60] sm:$0xff]
        %v314 = vld [vmem:[#allocation2 + $0x68] sm:$0xff]
        %v315 = vld [vmem:[#allocation2 + $0x70] sm:$0xff]
        %v316 = vld [vmem:[#allocation2 + $0x78] sm:$0xff]
        %v317 = vld [vmem:[#allocation2 + $0x80] sm:$0xff]
        %v318 = vld [vmem:[#allocation2 + $0x88] sm:$0xff]
        %v319 = vld [vmem:[#allocation2 + $0x90] sm:$0xff]
        %v320 = vld [vmem:[#allocation2 + $0x98] sm:$0xff]
        %v321 = vld [vmem:[#allocation2 + $0xa0] sm:$0xff]
        %v322 = vld [vmem:[#allocation2 + $0xa8] sm:$0xff]
        %v323 = vld [vmem:[#allocation2 + $0xb0] sm:$0xff]
        %v324 = vld [vmem:[#allocation2 + $0xb8] sm:$0xff]
        %v325 = vld [vmem:[#allocation2 + $0xc0] sm:$0xff]
        %v326 = vld [vmem:[#allocation2 + $0xc8] sm:$0xff]
        %v327 = vld [vmem:[#allocation2 + $0xd0] sm:$0xff]
        %v328 = vld [vmem:[#allocation2 + $0xd8] sm:$0xff]
        %v329 = vld [vmem:[#allocation2 + $0xe0] sm:$0xff]
        %v330 = vld [vmem:[#allocation2 + $0xe8] sm:$0xff]
        %v331 = vld [vmem:[#allocation2 + $0xf0] sm:$0xff]
        %v332 = vld [vmem:[#allocation2 + $0xf8] sm:$0xff]
        %v333 = vld [vmem:[#allocation2 + $0x100] sm:$0xff]
        %v334 = vld [vmem:[#allocation2 + $0x108] sm:$0xff]
        %v335 = vld [vmem:[#allocation2 + $0x110] sm:$0xff]
        %v336 = vld [vmem:[#allocation2 + $0x118] sm:$0xff]
        %v337 = vld [vmem:[#allocation2 + $0x120] sm:$0xff]
        %v338 = vld [vmem:[#allocation2 + $0x128] sm:$0xff]
        %v339 = vld [vmem:[#allocation2 + $0x130] sm:$0xff]
        %v340 = vld [vmem:[#allocation2 + $0x138] sm:$0xff]
        %v341 = vld [vmem:[#allocation2 + $0x140] sm:$0xff]
        %v342 = vld [vmem:[#allocation2 + $0x148] sm:$0xff]
        %v343 = vld [vmem:[#allocation2 + $0x150] sm:$0xff]
        %v344 = vld [vmem:[#allocation2 + $0x158] sm:$0xff]
        %v345 = vld [vmem:[#allocation2 + $0x160] sm:$0xff]
        %v346 = vld [vmem:[#allocation2 + $0x168] sm:$0xff]
        %v347 = vld [vmem:[#allocation2 + $0x170] sm:$0xff]
        %v348 = vld [vmem:[#allocation2 + $0x178] sm:$0xff]
        %v349 = vld [vmem:[#allocation2 + $0x180] sm:$0xff]
        %v350 = vld [vmem:[#allocation2 + $0x188] sm:$0xff]
        %v351 = vld [vmem:[#allocation2 + $0x190] sm:$0xff]
        %v352 = vld [vmem:[#allocation2 + $0x198] sm:$0xff]
        %v353 = vld [vmem:[#allocation2 + $0x1a0] sm:$0xff]
        %v354 = vld [vmem:[#allocation2 + $0x1a8] sm:$0xff]
        %v355 = vld [vmem:[#allocation2 + $0x1b0] sm:$0xff]
        %v356 = vld [vmem:[#allocation2 + $0x1b8] sm:$0xff]
        %v357 = vld [vmem:[#allocation2 + $0x1c0] sm:$0xff]
        %v358 = vld [vmem:[#allocation2 + $0x1c8] sm:$0xff]
        %v359 = vld [vmem:[#allocation2 + $0x1d0] sm:$0xff]
        %v360 = vld [vmem:[#allocation2 + $0x1d8] sm:$0xff]
        %v361 = vld [vmem:[#allocation2 + $0x1e0] sm:$0xff]
        %v362 = vld [vmem:[#allocation2 + $0x1e8] sm:$0xff]
        %v363 = vld [vmem:[#allocation2 + $0x1f0] sm:$0xff]
        %v364 = vld [vmem:[#allocation2 + $0x1f8] sm:$0xff]
        %v365 = vld [vmem:[#allocation2 + $0x200] sm:$0xff]
        %v366 = vld [vmem:[#allocation2 + $0x208] sm:$0xff]
        %v367 = vld [vmem:[#allocation2 + $0x210] sm:$0xff]
        %v368 = vld [vmem:[#allocation2 + $0x218] sm:$0xff]
        %v369 = vld [vmem:[#allocation2 + $0x220] sm:$0xff]
        %v370 = vld [vmem:[#allocation2 + $0x228] sm:$0xff]
        %v371 = vld [vmem:[#allocation2 + $0x230] sm:$0xff]
        %v372 = vld [vmem:[#allocation2 + $0x238] sm:$0xff]
        %v373 = vld [vmem:[#allocation2 + $0x240] sm:$0xff]
        %v374 = vld [vmem:[#allocation2 + $0x248] sm:$0xff]
        %v375 = vld [vmem:[#allocation2 + $0x250] sm:$0xff]
        %v376 = vld [vmem:[#allocation2 + $0x258] sm:$0xff]
        %v377 = vld [vmem:[#allocation2 + $0x260] sm:$0xff]
        %v378 = vld [vmem:[#allocation2 + $0x268] sm:$0xff]
        %v379 = vld [vmem:[#allocation2 + $0x270] sm:$0xff]
        %v380 = vld [vmem:[#allocation2 + $0x278] sm:$0xff]
        %v381 = vld [vmem:[#allocation2 + $0x280] sm:$0xff]
        %v382 = vld [vmem:[#allocation2 + $0x288] sm:$0xff]
        %v383 = vld [vmem:[#allocation2 + $0x290] sm:$0xff]
        %v384 = vld [vmem:[#allocation2 + $0x298] sm:$0xff]
        %v385 = vld [vmem:[#allocation2 + $0x2a0] sm:$0xff]
        %v386 = vld [vmem:[#allocation2 + $0x2a8] sm:$0xff]
        %v387 = vld [vmem:[#allocation2 + $0x2b0] sm:$0xff]
        %v388 = vld [vmem:[#allocation2 + $0x2b8] sm:$0xff]
        %v389 = vld [vmem:[#allocation2 + $0x2c0] sm:$0xff]
        %v390 = vld [vmem:[#allocation2 + $0x2c8] sm:$0xff]
        %v391 = vld [vmem:[#allocation2 + $0x2d0] sm:$0xff]
        %v392 = vld [vmem:[#allocation2 + $0x2d8] sm:$0xff]
        %v393 = vld [vmem:[#allocation2 + $0x2e0] sm:$0xff]
        %v394 = vld [vmem:[#allocation2 + $0x2e8] sm:$0xff]
        %v395 = vld [vmem:[#allocation2 + $0x2f0] sm:$0xff]
        %v396 = vld [vmem:[#allocation2 + $0x2f8] sm:$0xff]
        %v397 = vld [vmem:[#allocation2 + $0x300] sm:$0xff]
        %v398 = vld [vmem:[#allocation2 + $0x308] sm:$0xff]
        %v399 = vld [vmem:[#allocation2 + $0x310] sm:$0xff]
        %v400 = vld [vmem:[#allocation2 + $0x318] sm:$0xff]
        %v401 = vld [vmem:[#allocation2 + $0x320] sm:$0xff]
        %v402 = vld [vmem:[#allocation2 + $0x328] sm:$0xff]
        %v403 = vld [vmem:[#allocation2 + $0x330] sm:$0xff]
        %v404 = vld [vmem:[#allocation2 + $0x338] sm:$0xff]
        %v405 = vld [vmem:[#allocation2 + $0x340] sm:$0xff]
        %v406 = vld [vmem:[#allocation2 + $0x348] sm:$0xff]
        %v407 = vld [vmem:[#allocation2 + $0x350] sm:$0xff]
        %v408 = vld [vmem:[#allocation2 + $0x358] sm:$0xff]
        %v409 = vld [vmem:[#allocation2 + $0x360] sm:$0xff]
        %v410 = vld [vmem:[#allocation2 + $0x368] sm:$0xff]
        %v411 = vld [vmem:[#allocation2 + $0x370] sm:$0xff]
        %v412 = vld [vmem:[#allocation2 + $0x378] sm:$0xff]
        %v413 = vld [vmem:[#allocation2 + $0x380] sm:$0xff]
        %v414 = vld [vmem:[#allocation2 + $0x388] sm:$0xff]
        %v415 = vld [vmem:[#allocation2 + $0x390] sm:$0xff]
        %v416 = vld [vmem:[#allocation2 + $0x398] sm:$0xff]
        %v417 = vld [vmem:[#allocation2 + $0x3a0] sm:$0xff]
        %v418 = vld [vmem:[#allocation2 + $0x3a8] sm:$0xff]
        %v419 = vld [vmem:[#allocation2 + $0x3b0] sm:$0xff]
        %v420 = vld [vmem:[#allocation2 + $0x3b8] sm:$0xff]
        %v421 = vld [vmem:[#allocation2 + $0x3c0] sm:$0xff]
        %v422 = vld [vmem:[#allocation2 + $0x3c8] sm:$0xff]
        %v423 = vld [vmem:[#allocation2 + $0x3d0] sm:$0xff]
        %v424 = vld [vmem:[#allocation2 + $0x3d8] sm:$0xff]
        %v425 = vld [vmem:[#allocation2 + $0x3e0] sm:$0xff]
        %v426 = vld [vmem:[#allocation2 + $0x3e8] sm:$0xff]
        %v427 = vld [vmem:[#allocation2 + $0x3f0] sm:$0xff]
        %v428 = vld [vmem:[#allocation2 + $0x3f8] sm:$0xff]
        %v429 = vld [vmem:[#allocation2 + $0x400] sm:$0xff]
        %v430 = vld [vmem:[#allocation2 + $0x408] sm:$0xff]
        %v431 = vld [vmem:[#allocation2 + $0x410] sm:$0xff]
        %v432 = vld [vmem:[#allocation2 + $0x418] sm:$0xff]
        %v433 = vld [vmem:[#allocation2 + $0x420] sm:$0xff]
        %v434 = vld [vmem:[#allocation2 + $0x428] sm:$0xff]
        %v435 = vld [vmem:[#allocation2 + $0x430] sm:$0xff]
        %v436 = vld [vmem:[#allocation2 + $0x438] sm:$0xff]
        %v437 = vld [vmem:[#allocation2 + $0x440] sm:$0xff]
        %v438 = vld [vmem:[#allocation2 + $0x448] sm:$0xff]
        %v439 = vld [vmem:[#allocation2 + $0x450] sm:$0xff]
        %v440 = vld [vmem:[#allocation2 + $0x458] sm:$0xff]
        %v441 = vld [vmem:[#allocation2 + $0x460] sm:$0xff]
        %v442 = vld [vmem:[#allocation2 + $0x468] sm:$0xff]
        %v443 = vld [vmem:[#allocation2 + $0x470] sm:$0xff]
        %v444 = vld [vmem:[#allocation2 + $0x478] sm:$0xff]
        %v445 = vld [vmem:[#allocation2 + $0x480] sm:$0xff]
        %v446 = vld [vmem:[#allocation2 + $0x488] sm:$0xff]
        %v447 = vld [vmem:[#allocation2 + $0x490] sm:$0xff]
        %v448 = vld [vmem:[#allocation2 + $0x498] sm:$0xff]
        %v449 = vld [vmem:[#allocation2 + $0x4a0] sm:$0xff]
        %v450 = vld [vmem:[#allocation2 + $0x4a8] sm:$0xff]
        %v451 = vld [vmem:[#allocation2 + $0x4b0] sm:$0xff]
        %v452 = vld [vmem:[#allocation2 + $0x4b8] sm:$0xff]
        %v453 = vld [vmem:[#allocation2 + $0x4c0] sm:$0xff]
        %v454 = vld [vmem:[#allocation2 + $0x4c8] sm:$0xff]
        %v455 = vld [vmem:[#allocation2 + $0x4d0] sm:$0xff]
        %v456 = vld [vmem:[#allocation2 + $0x4d8] sm:$0xff]
        %v457 = vld [vmem:[#allocation2 + $0x4e0] sm:$0xff]
        %v458 = vld [vmem:[#allocation2 + $0x4e8] sm:$0xff]
        %v459 = vld [vmem:[#allocation2 + $0x4f0] sm:$0xff]
        %v460 = vld [vmem:[#allocation2 + $0x4f8] sm:$0xff]
        %v461 = vld [vmem:[#allocation2 + $0x500] sm:$0xff]
        %v462 = vld [vmem:[#allocation2 + $0x508] sm:$0xff]
        %v463 = vld [vmem:[#allocation2 + $0x510] sm:$0xff]
        %v464 = vld [vmem:[#allocation2 + $0x518] sm:$0xff]
        %v465 = vld [vmem:[#allocation2 + $0x520] sm:$0xff]
        %v466 = vld [vmem:[#allocation2 + $0x528] sm:$0xff]
        %v467 = vld [vmem:[#allocation2 + $0x530] sm:$0xff]
        %v468 = vld [vmem:[#allocation2 + $0x538] sm:$0xff]
        %v469 = vld [vmem:[#allocation2 + $0x540] sm:$0xff]
        %v470 = vld [vmem:[#allocation2 + $0x548] sm:$0xff]
        %v471 = vld [vmem:[#allocation2 + $0x550] sm:$0xff]
        %v472 = vld [vmem:[#allocation2 + $0x558] sm:$0xff]
        %v473 = vld [vmem:[#allocation2 + $0x560] sm:$0xff]
        %v474 = vld [vmem:[#allocation2 + $0x568] sm:$0xff]
        %v475 = vld [vmem:[#allocation2 + $0x570] sm:$0xff]
        %v476 = vld [vmem:[#allocation2 + $0x578] sm:$0xff]
        %v477 = vld [vmem:[#allocation2 + $0x580] sm:$0xff]
        %v478 = vld [vmem:[#allocation2 + $0x588] sm:$0xff]
        %v479 = vld [vmem:[#allocation2 + $0x590] sm:$0xff]
        %v480 = vld [vmem:[#allocation2 + $0x598] sm:$0xff]
        %v481 = vld [vmem:[#allocation2 + $0x5a0] sm:$0xff]
        %v482 = vld [vmem:[#allocation2 + $0x5a8] sm:$0xff]
        %v483 = vld [vmem:[#allocation2 + $0x5b0] sm:$0xff]
        %v484 = vld [vmem:[#allocation2 + $0x5b8] sm:$0xff]
        %v485 = vld [vmem:[#allocation2 + $0x5c0] sm:$0xff]
        %v486 = vld [vmem:[#allocation2 + $0x5c8] sm:$0xff]
        %v487 = vld [vmem:[#allocation2 + $0x5d0] sm:$0xff]
        %v488 = vld [vmem:[#allocation2 + $0x5d8] sm:$0xff]
        %v489 = vld [vmem:[#allocation2 + $0x5e0] sm:$0xff]
        %v490 = vld [vmem:[#allocation2 + $0x5e8] sm:$0xff]
        %v491 = vld [vmem:[#allocation2 + $0x5f0] sm:$0xff]
        %v492 = vld [vmem:[#allocation2 + $0x5f8] sm:$0xff]
        %v493 = vld [vmem:[#allocation2 + $0x600] sm:$0xff]
        %v494 = vld [vmem:[#allocation2 + $0x608] sm:$0xff]
        %v495 = vld [vmem:[#allocation2 + $0x610] sm:$0xff]
        %v496 = vld [vmem:[#allocation2 + $0x618] sm:$0xff]
        %v497 = vld [vmem:[#allocation2 + $0x620] sm:$0xff]
        %v498 = vld [vmem:[#allocation2 + $0x628] sm:$0xff]
        %v499 = vld [vmem:[#allocation2 + $0x630] sm:$0xff]
        %v500 = vld [vmem:[#allocation2 + $0x638] sm:$0xff]
        %v501 = vld [vmem:[#allocation2 + $0x640] sm:$0xff]
        %v502 = vld [vmem:[#allocation2 + $0x648] sm:$0xff]
        %v503 = vld [vmem:[#allocation2 + $0x650] sm:$0xff]
        %v504 = vld [vmem:[#allocation2 + $0x658] sm:$0xff]
        %v505 = vld [vmem:[#allocation2 + $0x660] sm:$0xff]
        %v506 = vld [vmem:[#allocation2 + $0x668] sm:$0xff]
        %v507 = vld [vmem:[#allocation2 + $0x670] sm:$0xff]
        %v508 = vld [vmem:[#allocation2 + $0x678] sm:$0xff]
        %v509 = vld [vmem:[#allocation2 + $0x680] sm:$0xff]
        %v510 = vld [vmem:[#allocation2 + $0x688] sm:$0xff]
        %v511 = vld [vmem:[#allocation2 + $0x690] sm:$0xff]
        %v512 = vld [vmem:[#allocation2 + $0x698] sm:$0xff]
        %v513 = vld [vmem:[#allocation2 + $0x6a0] sm:$0xff]
        %v514 = vld [vmem:[#allocation2 + $0x6a8] sm:$0xff]
        %v515 = vld [vmem:[#allocation2 + $0x6b0] sm:$0xff]
        %v516 = vld [vmem:[#allocation2 + $0x6b8] sm:$0xff]
        %v517 = vld [vmem:[#allocation2 + $0x6c0] sm:$0xff]
        %v518 = vld [vmem:[#allocation2 + $0x6c8] sm:$0xff]
        %v519 = vld [vmem:[#allocation2 + $0x6d0] sm:$0xff]
        %v520 = vld [vmem:[#allocation2 + $0x6d8] sm:$0xff]
        %v521 = vld [vmem:[#allocation2 + $0x6e0] sm:$0xff]
        %v522 = vld [vmem:[#allocation2 + $0x6e8] sm:$0xff]
        %v523 = vld [vmem:[#allocation2 + $0x6f0] sm:$0xff]
        %v524 = vld [vmem:[#allocation2 + $0x6f8] sm:$0xff]
        %v525 = vld [vmem:[#allocation2 + $0x700] sm:$0xff]
        %v526 = vld [vmem:[#allocation2 + $0x708] sm:$0xff]
        %v527 = vld [vmem:[#allocation2 + $0x710] sm:$0xff]
        %v528 = vld [vmem:[#allocation2 + $0x718] sm:$0xff]
        %v529 = vld [vmem:[#allocation2 + $0x720] sm:$0xff]
        %v530 = vld [vmem:[#allocation2 + $0x728] sm:$0xff]
        %v531 = vld [vmem:[#allocation2 + $0x730] sm:$0xff]
        %v532 = vld [vmem:[#allocation2 + $0x738] sm:$0xff]
        %v533 = vld [vmem:[#allocation2 + $0x740] sm:$0xff]
        %v534 = vld [vmem:[#allocation2 + $0x748] sm:$0xff]
        %v535 = vld [vmem:[#allocation2 + $0x750] sm:$0xff]
        %v536 = vld [vmem:[#allocation2 + $0x758] sm:$0xff]
        %v537 = vld [vmem:[#allocation2 + $0x760] sm:$0xff]
        %v538 = vld [vmem:[#allocation2 + $0x768] sm:$0xff]
        %v539 = vld [vmem:[#allocation2 + $0x770] sm:$0xff]
        %v540 = vld [vmem:[#allocation2 + $0x778] sm:$0xff]
        %v541 = vld [vmem:[#allocation2 + $0x780] sm:$0xff]
        %v542 = vld [vmem:[#allocation2 + $0x788] sm:$0xff]
        %v543 = vld [vmem:[#allocation2 + $0x790] sm:$0xff]
        %v544 = vld [vmem:[#allocation2 + $0x798] sm:$0xff]
        %v545 = vld [vmem:[#allocation2 + $0x7a0] sm:$0xff]
        %v546 = vld [vmem:[#allocation2 + $0x7a8] sm:$0xff]
        %v547 = vld [vmem:[#allocation2 + $0x7b0] sm:$0xff]
        %v548 = vld [vmem:[#allocation2 + $0x7b8] sm:$0xff]
        %v549 = vld [vmem:[#allocation2 + $0x7c0] sm:$0xff]
        %v550 = vld [vmem:[#allocation2 + $0x7c8] sm:$0xff]
        %v551 = vld [vmem:[#allocation2 + $0x7d0] sm:$0xff]
        %v552 = vld [vmem:[#allocation2 + $0x7d8] sm:$0xff]
        %v553 = vld [vmem:[#allocation2 + $0x7e0] sm:$0xff]
        %v554 = vld [vmem:[#allocation2 + $0x7e8] sm:$0xff]
        %v555 = vld [vmem:[#allocation2 + $0x7f0] sm:$0xff]
        %v556 = vld [vmem:[#allocation2 + $0x7f8] sm:$0xff]
        %v557 = vld [vmem:[#allocation2 + $0x800] sm:$0xff]
        %v558 = vld [vmem:[#allocation2 + $0x808] sm:$0xff]
        %v559 = vld [vmem:[#allocation2 + $0x810] sm:$0xff]
        %v560 = vld [vmem:[#allocation2 + $0x818] sm:$0xff]
        %v561 = vld [vmem:[#allocation2 + $0x820] sm:$0xff]
        %v562 = vld [vmem:[#allocation2 + $0x828] sm:$0xff]
        %v563 = vld [vmem:[#allocation2 + $0x830] sm:$0xff]
        %v564 = vld [vmem:[#allocation2 + $0x838] sm:$0xff]
        %v565 = vld [vmem:[#allocation2 + $0x840] sm:$0xf]
        %v566 = vld [vmem:[#allocation2 + $0x848] sm:$0xf]
        %v567 = vld [vmem:[#allocation2 + $0x850] sm:$0xf]
        %v568 = vld [vmem:[#allocation2 + $0x858] sm:$0xf]
        %v569 = vld [vmem:[#allocation2 + $0x860] sm:$0xf]
        %v570 = vld [vmem:[#allocation2 + $0x868] sm:$0xf]
        %v571 = vld [vmem:[#allocation2 + $0x870] sm:$0xf]
        %v572 = vld [vmem:[#allocation2 + $0x878] sm:$0xf]
        %v573 = vld [vmem:[#allocation2 + $0x880] sm:$0xf]
        %v574 = vld [vmem:[#allocation2 + $0x888] sm:$0xf]
        %v575 = vld [vmem:[#allocation2 + $0x890] sm:$0xf]
        %v576 = vmax.f32 %v301, 0.0
        %v577 = vmax.f32 %v302, 0.0
        %v578 = vmax.f32 %v303, 0.0
        %v579 = vmax.f32 %v304, 0.0
        %v580 = vmax.f32 %v305, 0.0
        %v581 = vmax.f32 %v306, 0.0
        %v582 = vmax.f32 %v307, 0.0
        %v583 = vmax.f32 %v308, 0.0
        %v584 = vmax.f32 %v309, 0.0
        %v585 = vmax.f32 %v310, 0.0
        %v586 = vmax.f32 %v311, 0.0
        %v587 = vmax.f32 %v312, 0.0
        %v588 = vmax.f32 %v313, 0.0
        %v589 = vmax.f32 %v314, 0.0
        %v590 = vmax.f32 %v315, 0.0
        %v591 = vmax.f32 %v316, 0.0
        %v592 = vmax.f32 %v317, 0.0
        %v593 = vmax.f32 %v318, 0.0
        %v594 = vmax.f32 %v319, 0.0
        %v595 = vmax.f32 %v320, 0.0
        %v596 = vmax.f32 %v321, 0.0
        %v597 = vmax.f32 %v322, 0.0
        %v598 = vmax.f32 %v323, 0.0
        %v599 = vmax.f32 %v324, 0.0
        %v600 = vmax.f32 %v325, 0.0
        %v601 = vmax.f32 %v326, 0.0
        %v602 = vmax.f32 %v327, 0.0
        %v603 = vmax.f32 %v328, 0.0
        %v604 = vmax.f32 %v329, 0.0
        %v605 = vmax.f32 %v330, 0.0
        %v606 = vmax.f32 %v331, 0.0
        %v607 = vmax.f32 %v332, 0.0
        %v608 = vmax.f32 %v333, 0.0
        %v609 = vmax.f32 %v334, 0.0
        %v610 = vmax.f32 %v335, 0.0
        %v611 = vmax.f32 %v336, 0.0
        %v612 = vmax.f32 %v337, 0.0
        %v613 = vmax.f32 %v338, 0.0
        %v614 = vmax.f32 %v339, 0.0
        %v615 = vmax.f32 %v340, 0.0
        %v616 = vmax.f32 %v341, 0.0
        %v617 = vmax.f32 %v342, 0.0
        %v618 = vmax.f32 %v343, 0.0
        %v619 = vmax.f32 %v344, 0.0
        %v620 = vmax.f32 %v345, 0.0
        %v621 = vmax.f32 %v346, 0.0
        %v622 = vmax.f32 %v347, 0.0
        %v623 = vmax.f32 %v348, 0.0
        %v624 = vmax.f32 %v349, 0.0
        %v625 = vmax.f32 %v350, 0.0
        %v626 = vmax.f32 %v351, 0.0
        %v627 = vmax.f32 %v352, 0.0
        %v628 = vmax.f32 %v353, 0.0
        %v629 = vmax.f32 %v354, 0.0
        %v630 = vmax.f32 %v355, 0.0
        %v631 = vmax.f32 %v356, 0.0
        %v632 = vmax.f32 %v357, 0.0
        %v633 = vmax.f32 %v358, 0.0
        %v634 = vmax.f32 %v359, 0.0
        %v635 = vmax.f32 %v360, 0.0
        %v636 = vmax.f32 %v361, 0.0
        %v637 = vmax.f32 %v362, 0.0
        %v638 = vmax.f32 %v363, 0.0
        %v639 = vmax.f32 %v364, 0.0
        %v640 = vmax.f32 %v365, 0.0
        %v641 = vmax.f32 %v366, 0.0
        %v642 = vmax.f32 %v367, 0.0
        %v643 = vmax.f32 %v368, 0.0
        %v644 = vmax.f32 %v369, 0.0
        %v645 = vmax.f32 %v370, 0.0
        %v646 = vmax.f32 %v371, 0.0
        %v647 = vmax.f32 %v372, 0.0
        %v648 = vmax.f32 %v373, 0.0
        %v649 = vmax.f32 %v374, 0.0
        %v650 = vmax.f32 %v375, 0.0
        %v651 = vmax.f32 %v376, 0.0
        %v652 = vmax.f32 %v377, 0.0
        %v653 = vmax.f32 %v378, 0.0
        %v654 = vmax.f32 %v379, 0.0
        %v655 = vmax.f32 %v380, 0.0
        %v656 = vmax.f32 %v381, 0.0
        %v657 = vmax.f32 %v382, 0.0
        %v658 = vmax.f32 %v383, 0.0
        %v659 = vmax.f32 %v384, 0.0
        %v660 = vmax.f32 %v385, 0.0
        %v661 = vmax.f32 %v386, 0.0
        %v662 = vmax.f32 %v387, 0.0
        %v663 = vmax.f32 %v388, 0.0
        %v664 = vmax.f32 %v389, 0.0
        %v665 = vmax.f32 %v390, 0.0
        %v666 = vmax.f32 %v391, 0.0
        %v667 = vmax.f32 %v392, 0.0
        %v668 = vmax.f32 %v393, 0.0
        %v669 = vmax.f32 %v394, 0.0
        %v670 = vmax.f32 %v395, 0.0
        %v671 = vmax.f32 %v396, 0.0
        %v672 = vmax.f32 %v397, 0.0
        %v673 = vmax.f32 %v398, 0.0
        %v674 = vmax.f32 %v399, 0.0
        %v675 = vmax.f32 %v400, 0.0
        %v676 = vmax.f32 %v401, 0.0
        %v677 = vmax.f32 %v402, 0.0
        %v678 = vmax.f32 %v403, 0.0
        %v679 = vmax.f32 %v404, 0.0
        %v680 = vmax.f32 %v405, 0.0
        %v681 = vmax.f32 %v406, 0.0
        %v682 = vmax.f32 %v407, 0.0
        %v683 = vmax.f32 %v408, 0.0
        %v684 = vmax.f32 %v409, 0.0
        %v685 = vmax.f32 %v410, 0.0
        %v686 = vmax.f32 %v411, 0.0
        %v687 = vmax.f32 %v412, 0.0
        %v688 = vmax.f32 %v413, 0.0
        %v689 = vmax.f32 %v414, 0.0
        %v690 = vmax.f32 %v415, 0.0
        %v691 = vmax.f32 %v416, 0.0
        %v692 = vmax.f32 %v417, 0.0
        %v693 = vmax.f32 %v418, 0.0
        %v694 = vmax.f32 %v419, 0.0
        %v695 = vmax.f32 %v420, 0.0
        %v696 = vmax.f32 %v421, 0.0
        %v697 = vmax.f32 %v422, 0.0
        %v698 = vmax.f32 %v423, 0.0
        %v699 = vmax.f32 %v424, 0.0
        %v700 = vmax.f32 %v425, 0.0
        %v701 = vmax.f32 %v426, 0.0
        %v702 = vmax.f32 %v427, 0.0
        %v703 = vmax.f32 %v428, 0.0
        %v704 = vmax.f32 %v429, 0.0
        %v705 = vmax.f32 %v430, 0.0
        %v706 = vmax.f32 %v431, 0.0
        %v707 = vmax.f32 %v432, 0.0
        %v708 = vmax.f32 %v433, 0.0
        %v709 = vmax.f32 %v434, 0.0
        %v710 = vmax.f32 %v435, 0.0
        %v711 = vmax.f32 %v436, 0.0
        %v712 = vmax.f32 %v437, 0.0
        %v713 = vmax.f32 %v438, 0.0
        %v714 = vmax.f32 %v439, 0.0
        %v715 = vmax.f32 %v440, 0.0
        %v716 = vmax.f32 %v441, 0.0
        %v717 = vmax.f32 %v442, 0.0
        %v718 = vmax.f32 %v443, 0.0
        %v719 = vmax.f32 %v444, 0.0
        %v720 = vmax.f32 %v445, 0.0
        %v721 = vmax.f32 %v446, 0.0
        %v722 = vmax.f32 %v447, 0.0
        %v723 = vmax.f32 %v448, 0.0
        %v724 = vmax.f32 %v449, 0.0
        %v725 = vmax.f32 %v450, 0.0
        %v726 = vmax.f32 %v451, 0.0
        %v727 = vmax.f32 %v452, 0.0
        %v728 = vmax.f32 %v453, 0.0
        %v729 = vmax.f32 %v454, 0.0
        %v730 = vmax.f32 %v455, 0.0
        %v731 = vmax.f32 %v456, 0.0
        %v732 = vmax.f32 %v457, 0.0
        %v733 = vmax.f32 %v458, 0.0
        %v734 = vmax.f32 %v459, 0.0
        %v735 = vmax.f32 %v460, 0.0
        %v736 = vmax.f32 %v461, 0.0
        %v737 = vmax.f32 %v462, 0.0
        %v738 = vmax.f32 %v463, 0.0
        %v739 = vmax.f32 %v464, 0.0
        %v740 = vmax.f32 %v465, 0.0
        %v741 = vmax.f32 %v466, 0.0
        %v742 = vmax.f32 %v467, 0.0
        %v743 = vmax.f32 %v468, 0.0
        %v744 = vmax.f32 %v469, 0.0
        %v745 = vmax.f32 %v470, 0.0
        %v746 = vmax.f32 %v471, 0.0
        %v747 = vmax.f32 %v472, 0.0
        %v748 = vmax.f32 %v473, 0.0
        %v749 = vmax.f32 %v474, 0.0
        %v750 = vmax.f32 %v475, 0.0
        %v751 = vmax.f32 %v476, 0.0
        %v752 = vmax.f32 %v477, 0.0
        %v753 = vmax.f32 %v478, 0.0
        %v754 = vmax.f32 %v479, 0.0
        %v755 = vmax.f32 %v480, 0.0
        %v756 = vmax.f32 %v481, 0.0
        %v757 = vmax.f32 %v482, 0.0
        %v758 = vmax.f32 %v483, 0.0
        %v759 = vmax.f32 %v484, 0.0
        %v760 = vmax.f32 %v485, 0.0
        %v761 = vmax.f32 %v486, 0.0
        %v762 = vmax.f32 %v487, 0.0
        %v763 = vmax.f32 %v488, 0.0
        %v764 = vmax.f32 %v489, 0.0
        %v765 = vmax.f32 %v490, 0.0
        %v766 = vmax.f32 %v491, 0.0
        %v767 = vmax.f32 %v492, 0.0
        %v768 = vmax.f32 %v493, 0.0
        %v769 = vmax.f32 %v494, 0.0
        %v770 = vmax.f32 %v495, 0.0
        %v771 = vmax.f32 %v496, 0.0
        %v772 = vmax.f32 %v497, 0.0
        %v773 = vmax.f32 %v498, 0.0
        %v774 = vmax.f32 %v499, 0.0
        %v775 = vmax.f32 %v500, 0.0
        %v776 = vmax.f32 %v501, 0.0
        %v777 = vmax.f32 %v502, 0.0
        %v778 = vmax.f32 %v503, 0.0
        %v779 = vmax.f32 %v504, 0.0
        %v780 = vmax.f32 %v505, 0.0
        %v781 = vmax.f32 %v506, 0.0
        %v782 = vmax.f32 %v507, 0.0
        %v783 = vmax.f32 %v508, 0.0
        %v784 = vmax.f32 %v509, 0.0
        %v785 = vmax.f32 %v510, 0.0
        %v786 = vmax.f32 %v511, 0.0
        %v787 = vmax.f32 %v512, 0.0
        %v788 = vmax.f32 %v513, 0.0
        %v789 = vmax.f32 %v514, 0.0
        %v790 = vmax.f32 %v515, 0.0
        %v791 = vmax.f32 %v516, 0.0
        %v792 = vmax.f32 %v517, 0.0
        %v793 = vmax.f32 %v518, 0.0
        %v794 = vmax.f32 %v519, 0.0
        %v795 = vmax.f32 %v520, 0.0
        %v796 = vmax.f32 %v521, 0.0
        %v797 = vmax.f32 %v522, 0.0
        %v798 = vmax.f32 %v523, 0.0
        %v799 = vmax.f32 %v524, 0.0
        %v800 = vmax.f32 %v525, 0.0
        %v801 = vmax.f32 %v526, 0.0
        %v802 = vmax.f32 %v527, 0.0
        %v803 = vmax.f32 %v528, 0.0
        %v804 = vmax.f32 %v529, 0.0
        %v805 = vmax.f32 %v530, 0.0
        %v806 = vmax.f32 %v531, 0.0
        %v807 = vmax.f32 %v532, 0.0
        %v808 = vmax.f32 %v533, 0.0
        %v809 = vmax.f32 %v534, 0.0
        %v810 = vmax.f32 %v535, 0.0
        %v811 = vmax.f32 %v536, 0.0
        %v812 = vmax.f32 %v537, 0.0
        %v813 = vmax.f32 %v538, 0.0
        %v814 = vmax.f32 %v539, 0.0
        %v815 = vmax.f32 %v540, 0.0
        %v816 = vmax.f32 %v541, 0.0
        %v817 = vmax.f32 %v542, 0.0
        %v818 = vmax.f32 %v543, 0.0
        %v819 = vmax.f32 %v544, 0.0
        %v820 = vmax.f32 %v545, 0.0
        %v821 = vmax.f32 %v546, 0.0
        %v822 = vmax.f32 %v547, 0.0
        %v823 = vmax.f32 %v548, 0.0
        %v824 = vmax.f32 %v549, 0.0
        %v825 = vmax.f32 %v550, 0.0
        %v826 = vmax.f32 %v551, 0.0
        %v827 = vmax.f32 %v552, 0.0
        %v828 = vmax.f32 %v553, 0.0
        %v829 = vmax.f32 %v554, 0.0
        %v830 = vmax.f32 %v555, 0.0
        %v831 = vmax.f32 %v556, 0.0
        %v832 = vmax.f32 %v557, 0.0
        %v833 = vmax.f32 %v558, 0.0
        %v834 = vmax.f32 %v559, 0.0
        %v835 = vmax.f32 %v560, 0.0
        %v836 = vmax.f32 %v561, 0.0
        %v837 = vmax.f32 %v562, 0.0
        %v838 = vmax.f32 %v563, 0.0
        %v839 = vmax.f32 %v564, 0.0
        %v840 = vmax.f32 %v565, 0.0
        %v841 = vmax.f32 %v566, 0.0
        %v842 = vmax.f32 %v567, 0.0
        %v843 = vmax.f32 %v568, 0.0
        %v844 = vmax.f32 %v569, 0.0
        %v845 = vmax.f32 %v570, 0.0
        %v846 = vmax.f32 %v571, 0.0
        %v847 = vmax.f32 %v572, 0.0
        %v848 = vmax.f32 %v573, 0.0
        %v849 = vmax.f32 %v574, 0.0
        %v850 = vmax.f32 %v575, 0.0
        %v851 = vld [vmem:[%s249] sm:$0xff]
        %v852 = vld [vmem:[%s249 + $0x8] sm:$0xff]
        %v853 = vld [vmem:[%s249 + $0x10] sm:$0xff]
        %v854 = vld [vmem:[%s249 + $0x18] sm:$0xff]
        %v855 = vld [vmem:[%s249 + $0x20] sm:$0xff]
        %v856 = vld [vmem:[%s249 + $0x28] sm:$0xff]
        %v857 = vld [vmem:[%s249 + $0x30] sm:$0xff]
        %v858 = vld [vmem:[%s249 + $0x38] sm:$0xff]
        %v859 = vld [vmem:[%s249 + $0x40] sm:$0xff]
        %v860 = vld [vmem:[%s249 + $0x48] sm:$0xff]
        %v861 = vld [vmem:[%s249 + $0x50] sm:$0xff]
        %v862 = vld [vmem:[%s249 + $0x58] sm:$0xff]
        %v863 = vld [vmem:[%s249 + $0x60] sm:$0xff]
        %v864 = vld [vmem:[%s249 + $0x68] sm:$0xff]
        %v865 = vld [vmem:[%s249 + $0x70] sm:$0xff]
        %v866 = vld [vmem:[%s249 + $0x78] sm:$0xff]
        %v867 = vld [vmem:[%s249 + $0x80] sm:$0xff]
        %v868 = vld [vmem:[%s249 + $0x88] sm:$0xff]
        %v869 = vld [vmem:[%s249 + $0x90] sm:$0xff]
        %v870 = vld [vmem:[%s249 + $0x98] sm:$0xff]
        %v871 = vld [vmem:[%s249 + $0xa0] sm:$0xff]
        %v872 = vld [vmem:[%s249 + $0xa8] sm:$0xff]
        %v873 = vld [vmem:[%s249 + $0xb0] sm:$0xff]
        %v874 = vld [vmem:[%s249 + $0xb8] sm:$0xff]
        %v875 = vld [vmem:[%s249 + $0xc0] sm:$0xff]
        %v876 = vld [vmem:[%s249 + $0xc8] sm:$0xff]
        %v877 = vld [vmem:[%s249 + $0xd0] sm:$0xff]
        %v878 = vld [vmem:[%s249 + $0xd8] sm:$0xff]
        %v879 = vld [vmem:[%s249 + $0xe0] sm:$0xff]
        %v880 = vld [vmem:[%s249 + $0xe8] sm:$0xff]
        %v881 = vld [vmem:[%s249 + $0xf0] sm:$0xff]
        %v882 = vld [vmem:[%s249 + $0xf8] sm:$0xff]
        %v883 = vld [vmem:[%s249 + $0x100] sm:$0xff]
        %v884 = vld [vmem:[%s249 + $0x108] sm:$0xff]
        %v885 = vld [vmem:[%s249 + $0x110] sm:$0xff]
        %v886 = vld [vmem:[%s249 + $0x118] sm:$0xff]
        %v887 = vld [vmem:[%s249 + $0x120] sm:$0xff]
        %v888 = vld [vmem:[%s249 + $0x128] sm:$0xff]
        %v889 = vld [vmem:[%s249 + $0x130] sm:$0xff]
        %v890 = vld [vmem:[%s249 + $0x138] sm:$0xff]
        %v891 = vld [vmem:[%s249 + $0x140] sm:$0xff]
        %v892 = vld [vmem:[%s249 + $0x148] sm:$0xff]
        %v893 = vld [vmem:[%s249 + $0x150] sm:$0xff]
        %v894 = vld [vmem:[%s249 + $0x158] sm:$0xff]
        %v895 = vld [vmem:[%s249 + $0x160] sm:$0xff]
        %v896 = vld [vmem:[%s249 + $0x168] sm:$0xff]
        %v897 = vld [vmem:[%s249 + $0x170] sm:$0xff]
        %v898 = vld [vmem:[%s249 + $0x178] sm:$0xff]
        %v899 = vld [vmem:[%s249 + $0x180] sm:$0xff]
        %v900 = vld [vmem:[%s249 + $0x188] sm:$0xff]
        %v901 = vld [vmem:[%s249 + $0x190] sm:$0xff]
        %v902 = vld [vmem:[%s249 + $0x198] sm:$0xff]
        %v903 = vld [vmem:[%s249 + $0x1a0] sm:$0xff]
        %v904 = vld [vmem:[%s249 + $0x1a8] sm:$0xff]
        %v905 = vld [vmem:[%s249 + $0x1b0] sm:$0xff]
        %v906 = vld [vmem:[%s249 + $0x1b8] sm:$0xff]
        %v907 = vld [vmem:[%s249 + $0x1c0] sm:$0xff]
        %v908 = vld [vmem:[%s249 + $0x1c8] sm:$0xff]
        %v909 = vld [vmem:[%s249 + $0x1d0] sm:$0xff]
        %v910 = vld [vmem:[%s249 + $0x1d8] sm:$0xff]
        %v911 = vld [vmem:[%s249 + $0x1e0] sm:$0xff]
        %v912 = vld [vmem:[%s249 + $0x1e8] sm:$0xff]
        %v913 = vld [vmem:[%s249 + $0x1f0] sm:$0xff]
        %v914 = vld [vmem:[%s249 + $0x1f8] sm:$0xff]
        %v915 = vld [vmem:[%s249 + $0x200] sm:$0xff]
        %v916 = vld [vmem:[%s249 + $0x208] sm:$0xff]
        %v917 = vld [vmem:[%s249 + $0x210] sm:$0xff]
        %v918 = vld [vmem:[%s249 + $0x218] sm:$0xff]
        %v919 = vld [vmem:[%s249 + $0x220] sm:$0xff]
        %v920 = vld [vmem:[%s249 + $0x228] sm:$0xff]
        %v921 = vld [vmem:[%s249 + $0x230] sm:$0xff]
        %v922 = vld [vmem:[%s249 + $0x238] sm:$0xff]
        %v923 = vld [vmem:[%s249 + $0x240] sm:$0xff]
        %v924 = vld [vmem:[%s249 + $0x248] sm:$0xff]
        %v925 = vld [vmem:[%s249 + $0x250] sm:$0xff]
        %v926 = vld [vmem:[%s249 + $0x258] sm:$0xff]
        %v927 = vld [vmem:[%s249 + $0x260] sm:$0xff]
        %v928 = vld [vmem:[%s249 + $0x268] sm:$0xff]
        %v929 = vld [vmem:[%s249 + $0x270] sm:$0xff]
        %v930 = vld [vmem:[%s249 + $0x278] sm:$0xff]
        %v931 = vld [vmem:[%s249 + $0x280] sm:$0xff]
        %v932 = vld [vmem:[%s249 + $0x288] sm:$0xff]
        %v933 = vld [vmem:[%s249 + $0x290] sm:$0xff]
        %v934 = vld [vmem:[%s249 + $0x298] sm:$0xff]
        %v935 = vld [vmem:[%s249 + $0x2a0] sm:$0xff]
        %v936 = vld [vmem:[%s249 + $0x2a8] sm:$0xff]
        %v937 = vld [vmem:[%s249 + $0x2b0] sm:$0xff]
        %v938 = vld [vmem:[%s249 + $0x2b8] sm:$0xff]
        %v939 = vld [vmem:[%s249 + $0x2c0] sm:$0xff]
        %v940 = vld [vmem:[%s249 + $0x2c8] sm:$0xff]
        %v941 = vld [vmem:[%s249 + $0x2d0] sm:$0xff]
        %v942 = vld [vmem:[%s249 + $0x2d8] sm:$0xff]
        %v943 = vld [vmem:[%s249 + $0x2e0] sm:$0xff]
        %v944 = vld [vmem:[%s249 + $0x2e8] sm:$0xff]
        %v945 = vld [vmem:[%s249 + $0x2f0] sm:$0xff]
        %v946 = vld [vmem:[%s249 + $0x2f8] sm:$0xff]
        %v947 = vld [vmem:[%s249 + $0x300] sm:$0xff]
        %v948 = vld [vmem:[%s249 + $0x308] sm:$0xff]
        %v949 = vld [vmem:[%s249 + $0x310] sm:$0xff]
        %v950 = vld [vmem:[%s249 + $0x318] sm:$0xff]
        %v951 = vld [vmem:[%s249 + $0x320] sm:$0xff]
        %v952 = vld [vmem:[%s249 + $0x328] sm:$0xff]
        %v953 = vld [vmem:[%s249 + $0x330] sm:$0xff]
        %v954 = vld [vmem:[%s249 + $0x338] sm:$0xff]
        %v955 = vld [vmem:[%s249 + $0x340] sm:$0xff]
        %v956 = vld [vmem:[%s249 + $0x348] sm:$0xff]
        %v957 = vld [vmem:[%s249 + $0x350] sm:$0xff]
        %v958 = vld [vmem:[%s249 + $0x358] sm:$0xff]
        %v959 = vld [vmem:[%s249 + $0x360] sm:$0xff]
        %v960 = vld [vmem:[%s249 + $0x368] sm:$0xff]
        %v961 = vld [vmem:[%s249 + $0x370] sm:$0xff]
        %v962 = vld [vmem:[%s249 + $0x378] sm:$0xff]
        %v963 = vld [vmem:[%s249 + $0x380] sm:$0xff]
        %v964 = vld [vmem:[%s249 + $0x388] sm:$0xff]
        %v965 = vld [vmem:[%s249 + $0x390] sm:$0xff]
        %v966 = vld [vmem:[%s249 + $0x398] sm:$0xff]
        %v967 = vld [vmem:[%s249 + $0x3a0] sm:$0xff]
        %v968 = vld [vmem:[%s249 + $0x3a8] sm:$0xff]
        %v969 = vld [vmem:[%s249 + $0x3b0] sm:$0xff]
        %v970 = vld [vmem:[%s249 + $0x3b8] sm:$0xff]
        %v971 = vld [vmem:[%s249 + $0x3c0] sm:$0xff]
        %v972 = vld [vmem:[%s249 + $0x3c8] sm:$0xff]
        %v973 = vld [vmem:[%s249 + $0x3d0] sm:$0xff]
        %v974 = vld [vmem:[%s249 + $0x3d8] sm:$0xff]
        %v975 = vld [vmem:[%s249 + $0x3e0] sm:$0xff]
        %v976 = vld [vmem:[%s249 + $0x3e8] sm:$0xff]
        %v977 = vld [vmem:[%s249 + $0x3f0] sm:$0xff]
        %v978 = vld [vmem:[%s249 + $0x3f8] sm:$0xff]
        %v979 = vld [vmem:[%s249 + $0x400] sm:$0xff]
        %v980 = vld [vmem:[%s249 + $0x408] sm:$0xff]
        %v981 = vld [vmem:[%s249 + $0x410] sm:$0xff]
        %v982 = vld [vmem:[%s249 + $0x418] sm:$0xff]
        %v983 = vld [vmem:[%s249 + $0x420] sm:$0xff]
        %v984 = vld [vmem:[%s249 + $0x428] sm:$0xff]
        %v985 = vld [vmem:[%s249 + $0x430] sm:$0xff]
        %v986 = vld [vmem:[%s249 + $0x438] sm:$0xff]
        %v987 = vld [vmem:[%s249 + $0x440] sm:$0xff]
        %v988 = vld [vmem:[%s249 + $0x448] sm:$0xff]
        %v989 = vld [vmem:[%s249 + $0x450] sm:$0xff]
        %v990 = vld [vmem:[%s249 + $0x458] sm:$0xff]
        %v991 = vld [vmem:[%s249 + $0x460] sm:$0xff]
        %v992 = vld [vmem:[%s249 + $0x468] sm:$0xff]
        %v993 = vld [vmem:[%s249 + $0x470] sm:$0xff]
        %v994 = vld [vmem:[%s249 + $0x478] sm:$0xff]
        %v995 = vld [vmem:[%s249 + $0x480] sm:$0xff]
        %v996 = vld [vmem:[%s249 + $0x488] sm:$0xff]
        %v997 = vld [vmem:[%s249 + $0x490] sm:$0xff]
        %v998 = vld [vmem:[%s249 + $0x498] sm:$0xff]
        %v999 = vld [vmem:[%s249 + $0x4a0] sm:$0xff]
        %v1000 = vld [vmem:[%s249 + $0x4a8] sm:$0xff]
        %v1001 = vld [vmem:[%s249 + $0x4b0] sm:$0xff]
        %v1002 = vld [vmem:[%s249 + $0x4b8] sm:$0xff]
        %v1003 = vld [vmem:[%s249 + $0x4c0] sm:$0xff]
        %v1004 = vld [vmem:[%s249 + $0x4c8] sm:$0xff]
        %v1005 = vld [vmem:[%s249 + $0x4d0] sm:$0xff]
        %v1006 = vld [vmem:[%s249 + $0x4d8] sm:$0xff]
        %v1007 = vld [vmem:[%s249 + $0x4e0] sm:$0xff]
        %v1008 = vld [vmem:[%s249 + $0x4e8] sm:$0xff]
        %v1009 = vld [vmem:[%s249 + $0x4f0] sm:$0xff]
        %v1010 = vld [vmem:[%s249 + $0x4f8] sm:$0xff]
        %v1011 = vld [vmem:[%s249 + $0x500] sm:$0xff]
        %v1012 = vld [vmem:[%s249 + $0x508] sm:$0xff]
        %v1013 = vld [vmem:[%s249 + $0x510] sm:$0xff]
        %v1014 = vld [vmem:[%s249 + $0x518] sm:$0xff]
        %v1015 = vld [vmem:[%s249 + $0x520] sm:$0xff]
        %v1016 = vld [vmem:[%s249 + $0x528] sm:$0xff]
        %v1017 = vld [vmem:[%s249 + $0x530] sm:$0xff]
        %v1018 = vld [vmem:[%s249 + $0x538] sm:$0xff]
        %vm1019 = vcmask 523264
        %v1021 = vsel %vm1019, %v586, 0
        %v1024 = vsel %vm1019, %v597, 0
        %v1027 = vsel %vm1019, %v608, 0
        %v1030 = vsel %vm1019, %v619, 0
        %v1033 = vsel %vm1019, %v630, 0
        %v1036 = vsel %vm1019, %v641, 0
        %v1039 = vsel %vm1019, %v652, 0
        %v1042 = vsel %vm1019, %v663, 0
        %v1045 = vsel %vm1019, %v674, 0
        %v1048 = vsel %vm1019, %v685, 0
        %v1051 = vsel %vm1019, %v696, 0
        %v1054 = vsel %vm1019, %v707, 0
        %v1057 = vsel %vm1019, %v718, 0
        %v1060 = vsel %vm1019, %v729, 0
        %v1063 = vsel %vm1019, %v740, 0
        %v1066 = vsel %vm1019, %v751, 0
        %v1069 = vsel %vm1019, %v762, 0
        %v1072 = vsel %vm1019, %v773, 0
        %v1075 = vsel %vm1019, %v784, 0
        %v1078 = vsel %vm1019, %v795, 0
        %v1081 = vsel %vm1019, %v806, 0
        %v1084 = vsel %vm1019, %v817, 0
        %v1087 = vsel %vm1019, %v828, 0
        %v1090 = vsel %vm1019, %v839, 0
        %v1093 = vsel %vm1019, %v850, 0
        %1095 = vmatpush.msra.mxu0 %v866
        %1096 = vmatpush.msra.mxu0 %v865
        %1097 = vmatpush.msra.mxu0 %v864
        %1098 = vmatpush.msra.mxu0 %v863
        %1099 = vmatpush.msra.mxu0 %v862
        %1100 = vmatpush.msra.mxu0 %v861
        %1101 = vmatpush.msra.mxu0 %v860
        %1102 = vmatpush.msra.mxu0 %v859
        %1103 = vmatpush.msra.mxu0 %v858
        %1104 = vmatpush.msra.mxu0 %v857
        %1105 = vmatpush.msra.mxu0 %v856
        %1106 = vmatpush.msra.mxu0 %v855
        %1107 = vmatpush.msra.mxu0 %v854
        %1108 = vmatpush.msra.mxu0 %v853
        %1109 = vmatpush.msra.mxu0 %v852
        %1110 = vmatpush.msra.mxu0 %v851
        %1111 = vmatmul.f32.gmra.mxu0 %v576
        %v1112 = vpop.f32.mrf.mxu0
        %v1113 = vadd.f32 0.0, %v1112
        %1114 = vmatmul.f32.gmra.mxu0 %v587
        %v1115 = vpop.f32.mrf.mxu0
        %v1116 = vadd.f32 0.0, %v1115
        %1117 = vmatmul.f32.gmra.mxu0 %v598
        %v1118 = vpop.f32.mrf.mxu0
        %v1119 = vadd.f32 0.0, %v1118
        %1120 = vmatmul.f32.gmra.mxu0 %v609
        %v1121 = vpop.f32.mrf.mxu0
        %v1122 = vadd.f32 0.0, %v1121
        %1123 = vmatmul.f32.gmra.mxu0 %v620
        %v1124 = vpop.f32.mrf.mxu0
        %v1125 = vadd.f32 0.0, %v1124
        %1126 = vmatmul.f32.gmra.mxu0 %v631
        %v1127 = vpop.f32.mrf.mxu0
        %v1128 = vadd.f32 0.0, %v1127
        %1129 = vmatmul.f32.gmra.mxu0 %v642
        %v1130 = vpop.f32.mrf.mxu0
        %v1131 = vadd.f32 0.0, %v1130
        %1132 = vmatmul.f32.gmra.mxu0 %v653
        %v1133 = vpop.f32.mrf.mxu0
        %v1134 = vadd.f32 0.0, %v1133
        %1135 = vmatmul.f32.gmra.mxu0 %v664
        %v1136 = vpop.f32.mrf.mxu0
        %v1137 = vadd.f32 0.0, %v1136
        %1138 = vmatmul.f32.gmra.mxu0 %v675
        %v1139 = vpop.f32.mrf.mxu0
        %v1140 = vadd.f32 0.0, %v1139
        %1141 = vmatmul.f32.gmra.mxu0 %v686
        %v1142 = vpop.f32.mrf.mxu0
        %v1143 = vadd.f32 0.0, %v1142
        %1144 = vmatmul.f32.gmra.mxu0 %v697
        %v1145 = vpop.f32.mrf.mxu0
        %v1146 = vadd.f32 0.0, %v1145
        %1147 = vmatmul.f32.gmra.mxu0 %v708
        %v1148 = vpop.f32.mrf.mxu0
        %v1149 = vadd.f32 0.0, %v1148
        %1150 = vmatmul.f32.gmra.mxu0 %v719
        %v1151 = vpop.f32.mrf.mxu0
        %v1152 = vadd.f32 0.0, %v1151
        %1153 = vmatmul.f32.gmra.mxu0 %v730
        %v1154 = vpop.f32.mrf.mxu0
        %v1155 = vadd.f32 0.0, %v1154
        %1156 = vmatmul.f32.gmra.mxu0 %v741
        %v1157 = vpop.f32.mrf.mxu0
        %v1158 = vadd.f32 0.0, %v1157
        %1159 = vmatmul.f32.gmra.mxu0 %v752
        %v1160 = vpop.f32.mrf.mxu0
        %v1161 = vadd.f32 0.0, %v1160
        %1162 = vmatmul.f32.gmra.mxu0 %v763
        %v1163 = vpop.f32.mrf.mxu0
        %v1164 = vadd.f32 0.0, %v1163
        %1165 = vmatmul.f32.gmra.mxu0 %v774
        %v1166 = vpop.f32.mrf.mxu0
        %v1167 = vadd.f32 0.0, %v1166
        %1168 = vmatmul.f32.gmra.mxu0 %v785
        %v1169 = vpop.f32.mrf.mxu0
        %v1170 = vadd.f32 0.0, %v1169
        %1171 = vmatmul.f32.gmra.mxu0 %v796
        %v1172 = vpop.f32.mrf.mxu0
        %v1173 = vadd.f32 0.0, %v1172
        %1174 = vmatmul.f32.gmra.mxu0 %v807
        %v1175 = vpop.f32.mrf.mxu0
        %v1176 = vadd.f32 0.0, %v1175
        %1177 = vmatmul.f32.gmra.mxu0 %v818
        %v1178 = vpop.f32.mrf.mxu0
        %v1179 = vadd.f32 0.0, %v1178
        %1180 = vmatmul.f32.gmra.mxu0 %v829
        %v1181 = vpop.f32.mrf.mxu0
        %v1182 = vadd.f32 0.0, %v1181
        %1183 = vmatmul.f32.gmra.mxu0 %v840
        %v1184 = vpop.f32.mrf.mxu0
        %v1185 = vadd.f32 0.0, %v1184
        %1186 = vdwg.mxu0
        %1187 = vmatpush.msra.mxu0 %v882
        %1188 = vmatpush.msra.mxu0 %v881
        %1189 = vmatpush.msra.mxu0 %v880
        %1190 = vmatpush.msra.mxu0 %v879
        %1191 = vmatpush.msra.mxu0 %v878
        %1192 = vmatpush.msra.mxu0 %v877
        %1193 = vmatpush.msra.mxu0 %v876
        %1194 = vmatpush.msra.mxu0 %v875
        %1195 = vmatpush.msra.mxu0 %v874
        %1196 = vmatpush.msra.mxu0 %v873
        %1197 = vmatpush.msra.mxu0 %v872
        %1198 = vmatpush.msra.mxu0 %v871
        %1199 = vmatpush.msra.mxu0 %v870
        %1200 = vmatpush.msra.mxu0 %v869
        %1201 = vmatpush.msra.mxu0 %v868
        %1202 = vmatpush.msra.mxu0 %v867
        %1203 = vmatmul.f32.gmra.mxu0 %v577
        %v1204 = vpop.f32.mrf.mxu0
        %v1205 = vadd.f32 %v1113, %v1204
        %1206 = vmatmul.f32.gmra.mxu0 %v588
        %v1207 = vpop.f32.mrf.mxu0
        %v1208 = vadd.f32 %v1116, %v1207
        %1209 = vmatmul.f32.gmra.mxu0 %v599
        %v1210 = vpop.f32.mrf.mxu0
        %v1211 = vadd.f32 %v1119, %v1210
        %1212 = vmatmul.f32.gmra.mxu0 %v610
        %v1213 = vpop.f32.mrf.mxu0
        %v1214 = vadd.f32 %v1122, %v1213
        %1215 = vmatmul.f32.gmra.mxu0 %v621
        %v1216 = vpop.f32.mrf.mxu0
        %v1217 = vadd.f32 %v1125, %v1216
        %1218 = vmatmul.f32.gmra.mxu0 %v632
        %v1219 = vpop.f32.mrf.mxu0
        %v1220 = vadd.f32 %v1128, %v1219
        %1221 = vmatmul.f32.gmra.mxu0 %v643
        %v1222 = vpop.f32.mrf.mxu0
        %v1223 = vadd.f32 %v1131, %v1222
        %1224 = vmatmul.f32.gmra.mxu0 %v654
        %v1225 = vpop.f32.mrf.mxu0
        %v1226 = vadd.f32 %v1134, %v1225
        %1227 = vmatmul.f32.gmra.mxu0 %v665
        %v1228 = vpop.f32.mrf.mxu0
        %v1229 = vadd.f32 %v1137, %v1228
        %1230 = vmatmul.f32.gmra.mxu0 %v676
        %v1231 = vpop.f32.mrf.mxu0
        %v1232 = vadd.f32 %v1140, %v1231
        %1233 = vmatmul.f32.gmra.mxu0 %v687
        %v1234 = vpop.f32.mrf.mxu0
        %v1235 = vadd.f32 %v1143, %v1234
        %1236 = vmatmul.f32.gmra.mxu0 %v698
        %v1237 = vpop.f32.mrf.mxu0
        %v1238 = vadd.f32 %v1146, %v1237
        %1239 = vmatmul.f32.gmra.mxu0 %v709
        %v1240 = vpop.f32.mrf.mxu0
        %v1241 = vadd.f32 %v1149, %v1240
        %1242 = vmatmul.f32.gmra.mxu0 %v720
        %v1243 = vpop.f32.mrf.mxu0
        %v1244 = vadd.f32 %v1152, %v1243
        %1245 = vmatmul.f32.gmra.mxu0 %v731
        %v1246 = vpop.f32.mrf.mxu0
        %v1247 = vadd.f32 %v1155, %v1246
        %1248 = vmatmul.f32.gmra.mxu0 %v742
        %v1249 = vpop.f32.mrf.mxu0
        %v1250 = vadd.f32 %v1158, %v1249
        %1251 = vmatmul.f32.gmra.mxu0 %v753
        %v1252 = vpop.f32.mrf.mxu0
        %v1253 = vadd.f32 %v1161, %v1252
        %1254 = vmatmul.f32.gmra.mxu0 %v764
        %v1255 = vpop.f32.mrf.mxu0
        %v1256 = vadd.f32 %v1164, %v1255
        %1257 = vmatmul.f32.gmra.mxu0 %v775
        %v1258 = vpop.f32.mrf.mxu0
        %v1259 = vadd.f32 %v1167, %v1258
        %1260 = vmatmul.f32.gmra.mxu0 %v786
        %v1261 = vpop.f32.mrf.mxu0
        %v1262 = vadd.f32 %v1170, %v1261
        %1263 = vmatmul.f32.gmra.mxu0 %v797
        %v1264 = vpop.f32.mrf.mxu0
        %v1265 = vadd.f32 %v1173, %v1264
        %1266 = vmatmul.f32.gmra.mxu0 %v808
        %v1267 = vpop.f32.mrf.mxu0
        %v1268 = vadd.f32 %v1176, %v1267
        %1269 = vmatmul.f32.gmra.mxu0 %v819
        %v1270 = vpop.f32.mrf.mxu0
        %v1271 = vadd.f32 %v1179, %v1270
        %1272 = vmatmul.f32.gmra.mxu0 %v830
        %v1273 = vpop.f32.mrf.mxu0
        %v1274 = vadd.f32 %v1182, %v1273
        %1275 = vmatmul.f32.gmra.mxu0 %v841
        %v1276 = vpop.f32.mrf.mxu0
        %v1277 = vadd.f32 %v1185, %v1276
        %1278 = vdwg.mxu0
        %1279 = vmatpush.msra.mxu0 %v898
        %1280 = vmatpush.msra.mxu0 %v897
        %1281 = vmatpush.msra.mxu0 %v896
        %1282 = vmatpush.msra.mxu0 %v895
        %1283 = vmatpush.msra.mxu0 %v894
        %1284 = vmatpush.msra.mxu0 %v893
        %1285 = vmatpush.msra.mxu0 %v892
        %1286 = vmatpush.msra.mxu0 %v891
        %1287 = vmatpush.msra.mxu0 %v890
        %1288 = vmatpush.msra.mxu0 %v889
        %1289 = vmatpush.msra.mxu0 %v888
        %1290 = vmatpush.msra.mxu0 %v887
        %1291 = vmatpush.msra.mxu0 %v886
        %1292 = vmatpush.msra.mxu0 %v885
        %1293 = vmatpush.msra.mxu0 %v884
        %1294 = vmatpush.msra.mxu0 %v883
        %1295 = vmatmul.f32.gmra.mxu0 %v578
        %v1296 = vpop.f32.mrf.mxu0
        %v1297 = vadd.f32 %v1205, %v1296
        %1298 = vmatmul.f32.gmra.mxu0 %v589
        %v1299 = vpop.f32.mrf.mxu0
        %v1300 = vadd.f32 %v1208, %v1299
        %1301 = vmatmul.f32.gmra.mxu0 %v600
        %v1302 = vpop.f32.mrf.mxu0
        %v1303 = vadd.f32 %v1211, %v1302
        %1304 = vmatmul.f32.gmra.mxu0 %v611
        %v1305 = vpop.f32.mrf.mxu0
        %v1306 = vadd.f32 %v1214, %v1305
        %1307 = vmatmul.f32.gmra.mxu0 %v622
        %v1308 = vpop.f32.mrf.mxu0
        %v1309 = vadd.f32 %v1217, %v1308
        %1310 = vmatmul.f32.gmra.mxu0 %v633
        %v1311 = vpop.f32.mrf.mxu0
        %v1312 = vadd.f32 %v1220, %v1311
        %1313 = vmatmul.f32.gmra.mxu0 %v644
        %v1314 = vpop.f32.mrf.mxu0
        %v1315 = vadd.f32 %v1223, %v1314
        %1316 = vmatmul.f32.gmra.mxu0 %v655
        %v1317 = vpop.f32.mrf.mxu0
        %v1318 = vadd.f32 %v1226, %v1317
        %1319 = vmatmul.f32.gmra.mxu0 %v666
        %v1320 = vpop.f32.mrf.mxu0
        %v1321 = vadd.f32 %v1229, %v1320
        %1322 = vmatmul.f32.gmra.mxu0 %v677
        %v1323 = vpop.f32.mrf.mxu0
        %v1324 = vadd.f32 %v1232, %v1323
        %1325 = vmatmul.f32.gmra.mxu0 %v688
        %v1326 = vpop.f32.mrf.mxu0
        %v1327 = vadd.f32 %v1235, %v1326
        %1328 = vmatmul.f32.gmra.mxu0 %v699
        %v1329 = vpop.f32.mrf.mxu0
        %v1330 = vadd.f32 %v1238, %v1329
        %1331 = vmatmul.f32.gmra.mxu0 %v710
        %v1332 = vpop.f32.mrf.mxu0
        %v1333 = vadd.f32 %v1241, %v1332
        %1334 = vmatmul.f32.gmra.mxu0 %v721
        %v1335 = vpop.f32.mrf.mxu0
        %v1336 = vadd.f32 %v1244, %v1335
        %1337 = vmatmul.f32.gmra.mxu0 %v732
        %v1338 = vpop.f32.mrf.mxu0
        %v1339 = vadd.f32 %v1247, %v1338
        %1340 = vmatmul.f32.gmra.mxu0 %v743
        %v1341 = vpop.f32.mrf.mxu0
        %v1342 = vadd.f32 %v1250, %v1341
        %1343 = vmatmul.f32.gmra.mxu0 %v754
        %v1344 = vpop.f32.mrf.mxu0
        %v1345 = vadd.f32 %v1253, %v1344
        %1346 = vmatmul.f32.gmra.mxu0 %v765
        %v1347 = vpop.f32.mrf.mxu0
        %v1348 = vadd.f32 %v1256, %v1347
        %1349 = vmatmul.f32.gmra.mxu0 %v776
        %v1350 = vpop.f32.mrf.mxu0
        %v1351 = vadd.f32 %v1259, %v1350
        %1352 = vmatmul.f32.gmra.mxu0 %v787
        %v1353 = vpop.f32.mrf.mxu0
        %v1354 = vadd.f32 %v1262, %v1353
        %1355 = vmatmul.f32.gmra.mxu0 %v798
        %v1356 = vpop.f32.mrf.mxu0
        %v1357 = vadd.f32 %v1265, %v1356
        %1358 = vmatmul.f32.gmra.mxu0 %v809
        %v1359 = vpop.f32.mrf.mxu0
        %v1360 = vadd.f32 %v1268, %v1359
        %1361 = vmatmul.f32.gmra.mxu0 %v820
        %v1362 = vpop.f32.mrf.mxu0
        %v1363 = vadd.f32 %v1271, %v1362
        %1364 = vmatmul.f32.gmra.mxu0 %v831
        %v1365 = vpop.f32.mrf.mxu0
        %v1366 = vadd.f32 %v1274, %v1365
        %1367 = vmatmul.f32.gmra.mxu0 %v842
        %v1368 = vpop.f32.mrf.mxu0
        %v1369 = vadd.f32 %v1277, %v1368
        %1370 = vdwg.mxu0
        %1371 = vmatpush.msra.mxu0 %v914
        %1372 = vmatpush.msra.mxu0 %v913
        %1373 = vmatpush.msra.mxu0 %v912
        %1374 = vmatpush.msra.mxu0 %v911
        %1375 = vmatpush.msra.mxu0 %v910
        %1376 = vmatpush.msra.mxu0 %v909
        %1377 = vmatpush.msra.mxu0 %v908
        %1378 = vmatpush.msra.mxu0 %v907
        %1379 = vmatpush.msra.mxu0 %v906
        %1380 = vmatpush.msra.mxu0 %v905
        %1381 = vmatpush.msra.mxu0 %v904
        %1382 = vmatpush.msra.mxu0 %v903
        %1383 = vmatpush.msra.mxu0 %v902
        %1384 = vmatpush.msra.mxu0 %v901
        %1385 = vmatpush.msra.mxu0 %v900
        %1386 = vmatpush.msra.mxu0 %v899
        %1387 = vmatmul.f32.gmra.mxu0 %v579
        %v1388 = vpop.f32.mrf.mxu0
        %v1389 = vadd.f32 %v1297, %v1388
        %1390 = vmatmul.f32.gmra.mxu0 %v590
        %v1391 = vpop.f32.mrf.mxu0
        %v1392 = vadd.f32 %v1300, %v1391
        %1393 = vmatmul.f32.gmra.mxu0 %v601
        %v1394 = vpop.f32.mrf.mxu0
        %v1395 = vadd.f32 %v1303, %v1394
        %1396 = vmatmul.f32.gmra.mxu0 %v612
        %v1397 = vpop.f32.mrf.mxu0
        %v1398 = vadd.f32 %v1306, %v1397
        %1399 = vmatmul.f32.gmra.mxu0 %v623
        %v1400 = vpop.f32.mrf.mxu0
        %v1401 = vadd.f32 %v1309, %v1400
        %1402 = vmatmul.f32.gmra.mxu0 %v634
        %v1403 = vpop.f32.mrf.mxu0
        %v1404 = vadd.f32 %v1312, %v1403
        %1405 = vmatmul.f32.gmra.mxu0 %v645
        %v1406 = vpop.f32.mrf.mxu0
        %v1407 = vadd.f32 %v1315, %v1406
        %1408 = vmatmul.f32.gmra.mxu0 %v656
        %v1409 = vpop.f32.mrf.mxu0
        %v1410 = vadd.f32 %v1318, %v1409
        %1411 = vmatmul.f32.gmra.mxu0 %v667
        %v1412 = vpop.f32.mrf.mxu0
        %v1413 = vadd.f32 %v1321, %v1412
        %1414 = vmatmul.f32.gmra.mxu0 %v678
        %v1415 = vpop.f32.mrf.mxu0
        %v1416 = vadd.f32 %v1324, %v1415
        %1417 = vmatmul.f32.gmra.mxu0 %v689
        %v1418 = vpop.f32.mrf.mxu0
        %v1419 = vadd.f32 %v1327, %v1418
        %1420 = vmatmul.f32.gmra.mxu0 %v700
        %v1421 = vpop.f32.mrf.mxu0
        %v1422 = vadd.f32 %v1330, %v1421
        %1423 = vmatmul.f32.gmra.mxu0 %v711
        %v1424 = vpop.f32.mrf.mxu0
        %v1425 = vadd.f32 %v1333, %v1424
        %1426 = vmatmul.f32.gmra.mxu0 %v722
        %v1427 = vpop.f32.mrf.mxu0
        %v1428 = vadd.f32 %v1336, %v1427
        %1429 = vmatmul.f32.gmra.mxu0 %v733
        %v1430 = vpop.f32.mrf.mxu0
        %v1431 = vadd.f32 %v1339, %v1430
        %1432 = vmatmul.f32.gmra.mxu0 %v744
        %v1433 = vpop.f32.mrf.mxu0
        %v1434 = vadd.f32 %v1342, %v1433
        %1435 = vmatmul.f32.gmra.mxu0 %v755
        %v1436 = vpop.f32.mrf.mxu0
        %v1437 = vadd.f32 %v1345, %v1436
        %1438 = vmatmul.f32.gmra.mxu0 %v766
        %v1439 = vpop.f32.mrf.mxu0
        %v1440 = vadd.f32 %v1348, %v1439
        %1441 = vmatmul.f32.gmra.mxu0 %v777
        %v1442 = vpop.f32.mrf.mxu0
        %v1443 = vadd.f32 %v1351, %v1442
        %1444 = vmatmul.f32.gmra.mxu0 %v788
        %v1445 = vpop.f32.mrf.mxu0
        %v1446 = vadd.f32 %v1354, %v1445
        %1447 = vmatmul.f32.gmra.mxu0 %v799
        %v1448 = vpop.f32.mrf.mxu0
        %v1449 = vadd.f32 %v1357, %v1448
        %1450 = vmatmul.f32.gmra.mxu0 %v810
        %v1451 = vpop.f32.mrf.mxu0
        %v1452 = vadd.f32 %v1360, %v1451
        %1453 = vmatmul.f32.gmra.mxu0 %v821
        %v1454 = vpop.f32.mrf.mxu0
        %v1455 = vadd.f32 %v1363, %v1454
        %1456 = vmatmul.f32.gmra.mxu0 %v832
        %v1457 = vpop.f32.mrf.mxu0
        %v1458 = vadd.f32 %v1366, %v1457
        %1459 = vmatmul.f32.gmra.mxu0 %v843
        %v1460 = vpop.f32.mrf.mxu0
        %v1461 = vadd.f32 %v1369, %v1460
        %1462 = vdwg.mxu0
        %1463 = vmatpush.msra.mxu0 %v930
        %1464 = vmatpush.msra.mxu0 %v929
        %1465 = vmatpush.msra.mxu0 %v928
        %1466 = vmatpush.msra.mxu0 %v927
        %1467 = vmatpush.msra.mxu0 %v926
        %1468 = vmatpush.msra.mxu0 %v925
        %1469 = vmatpush.msra.mxu0 %v924
        %1470 = vmatpush.msra.mxu0 %v923
        %1471 = vmatpush.msra.mxu0 %v922
        %1472 = vmatpush.msra.mxu0 %v921
        %1473 = vmatpush.msra.mxu0 %v920
        %1474 = vmatpush.msra.mxu0 %v919
        %1475 = vmatpush.msra.mxu0 %v918
        %1476 = vmatpush.msra.mxu0 %v917
        %1477 = vmatpush.msra.mxu0 %v916
        %1478 = vmatpush.msra.mxu0 %v915
        %1479 = vmatmul.f32.gmra.mxu0 %v580
        %v1480 = vpop.f32.mrf.mxu0
        %v1481 = vadd.f32 %v1389, %v1480
        %1482 = vmatmul.f32.gmra.mxu0 %v591
        %v1483 = vpop.f32.mrf.mxu0
        %v1484 = vadd.f32 %v1392, %v1483
        %1485 = vmatmul.f32.gmra.mxu0 %v602
        %v1486 = vpop.f32.mrf.mxu0
        %v1487 = vadd.f32 %v1395, %v1486
        %1488 = vmatmul.f32.gmra.mxu0 %v613
        %v1489 = vpop.f32.mrf.mxu0
        %v1490 = vadd.f32 %v1398, %v1489
        %1491 = vmatmul.f32.gmra.mxu0 %v624
        %v1492 = vpop.f32.mrf.mxu0
        %v1493 = vadd.f32 %v1401, %v1492
        %1494 = vmatmul.f32.gmra.mxu0 %v635
        %v1495 = vpop.f32.mrf.mxu0
        %v1496 = vadd.f32 %v1404, %v1495
        %1497 = vmatmul.f32.gmra.mxu0 %v646
        %v1498 = vpop.f32.mrf.mxu0
        %v1499 = vadd.f32 %v1407, %v1498
        %1500 = vmatmul.f32.gmra.mxu0 %v657
        %v1501 = vpop.f32.mrf.mxu0
        %v1502 = vadd.f32 %v1410, %v1501
        %1503 = vmatmul.f32.gmra.mxu0 %v668
        %v1504 = vpop.f32.mrf.mxu0
        %v1505 = vadd.f32 %v1413, %v1504
        %1506 = vmatmul.f32.gmra.mxu0 %v679
        %v1507 = vpop.f32.mrf.mxu0
        %v1508 = vadd.f32 %v1416, %v1507
        %1509 = vmatmul.f32.gmra.mxu0 %v690
        %v1510 = vpop.f32.mrf.mxu0
        %v1511 = vadd.f32 %v1419, %v1510
        %1512 = vmatmul.f32.gmra.mxu0 %v701
        %v1513 = vpop.f32.mrf.mxu0
        %v1514 = vadd.f32 %v1422, %v1513
        %1515 = vmatmul.f32.gmra.mxu0 %v712
        %v1516 = vpop.f32.mrf.mxu0
        %v1517 = vadd.f32 %v1425, %v1516
        %1518 = vmatmul.f32.gmra.mxu0 %v723
        %v1519 = vpop.f32.mrf.mxu0
        %v1520 = vadd.f32 %v1428, %v1519
        %1521 = vmatmul.f32.gmra.mxu0 %v734
        %v1522 = vpop.f32.mrf.mxu0
        %v1523 = vadd.f32 %v1431, %v1522
        %1524 = vmatmul.f32.gmra.mxu0 %v745
        %v1525 = vpop.f32.mrf.mxu0
        %v1526 = vadd.f32 %v1434, %v1525
        %1527 = vmatmul.f32.gmra.mxu0 %v756
        %v1528 = vpop.f32.mrf.mxu0
        %v1529 = vadd.f32 %v1437, %v1528
        %1530 = vmatmul.f32.gmra.mxu0 %v767
        %v1531 = vpop.f32.mrf.mxu0
        %v1532 = vadd.f32 %v1440, %v1531
        %1533 = vmatmul.f32.gmra.mxu0 %v778
        %v1534 = vpop.f32.mrf.mxu0
        %v1535 = vadd.f32 %v1443, %v1534
        %1536 = vmatmul.f32.gmra.mxu0 %v789
        %v1537 = vpop.f32.mrf.mxu0
        %v1538 = vadd.f32 %v1446, %v1537
        %1539 = vmatmul.f32.gmra.mxu0 %v800
        %v1540 = vpop.f32.mrf.mxu0
        %v1541 = vadd.f32 %v1449, %v1540
        %1542 = vmatmul.f32.gmra.mxu0 %v811
        %v1543 = vpop.f32.mrf.mxu0
        %v1544 = vadd.f32 %v1452, %v1543
        %1545 = vmatmul.f32.gmra.mxu0 %v822
        %v1546 = vpop.f32.mrf.mxu0
        %v1547 = vadd.f32 %v1455, %v1546
        %1548 = vmatmul.f32.gmra.mxu0 %v833
        %v1549 = vpop.f32.mrf.mxu0
        %v1550 = vadd.f32 %v1458, %v1549
        %1551 = vmatmul.f32.gmra.mxu0 %v844
        %v1552 = vpop.f32.mrf.mxu0
        %v1553 = vadd.f32 %v1461, %v1552
        %1554 = vdwg.mxu0
        %1555 = vmatpush.msra.mxu0 %v946
        %1556 = vmatpush.msra.mxu0 %v945
        %1557 = vmatpush.msra.mxu0 %v944
        %1558 = vmatpush.msra.mxu0 %v943
        %1559 = vmatpush.msra.mxu0 %v942
        %1560 = vmatpush.msra.mxu0 %v941
        %1561 = vmatpush.msra.mxu0 %v940
        %1562 = vmatpush.msra.mxu0 %v939
        %1563 = vmatpush.msra.mxu0 %v938
        %1564 = vmatpush.msra.mxu0 %v937
        %1565 = vmatpush.msra.mxu0 %v936
        %1566 = vmatpush.msra.mxu0 %v935
        %1567 = vmatpush.msra.mxu0 %v934
        %1568 = vmatpush.msra.mxu0 %v933
        %1569 = vmatpush.msra.mxu0 %v932
        %1570 = vmatpush.msra.mxu0 %v931
        %1571 = vmatmul.f32.gmra.mxu0 %v581
        %v1572 = vpop.f32.mrf.mxu0
        %v1573 = vadd.f32 %v1481, %v1572
        %1574 = vmatmul.f32.gmra.mxu0 %v592
        %v1575 = vpop.f32.mrf.mxu0
        %v1576 = vadd.f32 %v1484, %v1575
        %1577 = vmatmul.f32.gmra.mxu0 %v603
        %v1578 = vpop.f32.mrf.mxu0
        %v1579 = vadd.f32 %v1487, %v1578
        %1580 = vmatmul.f32.gmra.mxu0 %v614
        %v1581 = vpop.f32.mrf.mxu0
        %v1582 = vadd.f32 %v1490, %v1581
        %1583 = vmatmul.f32.gmra.mxu0 %v625
        %v1584 = vpop.f32.mrf.mxu0
        %v1585 = vadd.f32 %v1493, %v1584
        %1586 = vmatmul.f32.gmra.mxu0 %v636
        %v1587 = vpop.f32.mrf.mxu0
        %v1588 = vadd.f32 %v1496, %v1587
        %1589 = vmatmul.f32.gmra.mxu0 %v647
        %v1590 = vpop.f32.mrf.mxu0
        %v1591 = vadd.f32 %v1499, %v1590
        %1592 = vmatmul.f32.gmra.mxu0 %v658
        %v1593 = vpop.f32.mrf.mxu0
        %v1594 = vadd.f32 %v1502, %v1593
        %1595 = vmatmul.f32.gmra.mxu0 %v669
        %v1596 = vpop.f32.mrf.mxu0
        %v1597 = vadd.f32 %v1505, %v1596
        %1598 = vmatmul.f32.gmra.mxu0 %v680
        %v1599 = vpop.f32.mrf.mxu0
        %v1600 = vadd.f32 %v1508, %v1599
        %1601 = vmatmul.f32.gmra.mxu0 %v691
        %v1602 = vpop.f32.mrf.mxu0
        %v1603 = vadd.f32 %v1511, %v1602
        %1604 = vmatmul.f32.gmra.mxu0 %v702
        %v1605 = vpop.f32.mrf.mxu0
        %v1606 = vadd.f32 %v1514, %v1605
        %1607 = vmatmul.f32.gmra.mxu0 %v713
        %v1608 = vpop.f32.mrf.mxu0
        %v1609 = vadd.f32 %v1517, %v1608
        %1610 = vmatmul.f32.gmra.mxu0 %v724
        %v1611 = vpop.f32.mrf.mxu0
        %v1612 = vadd.f32 %v1520, %v1611
        %1613 = vmatmul.f32.gmra.mxu0 %v735
        %v1614 = vpop.f32.mrf.mxu0
        %v1615 = vadd.f32 %v1523, %v1614
        %1616 = vmatmul.f32.gmra.mxu0 %v746
        %v1617 = vpop.f32.mrf.mxu0
        %v1618 = vadd.f32 %v1526, %v1617
        %1619 = vmatmul.f32.gmra.mxu0 %v757
        %v1620 = vpop.f32.mrf.mxu0
        %v1621 = vadd.f32 %v1529, %v1620
        %1622 = vmatmul.f32.gmra.mxu0 %v768
        %v1623 = vpop.f32.mrf.mxu0
        %v1624 = vadd.f32 %v1532, %v1623
        %1625 = vmatmul.f32.gmra.mxu0 %v779
        %v1626 = vpop.f32.mrf.mxu0
        %v1627 = vadd.f32 %v1535, %v1626
        %1628 = vmatmul.f32.gmra.mxu0 %v790
        %v1629 = vpop.f32.mrf.mxu0
        %v1630 = vadd.f32 %v1538, %v1629
        %1631 = vmatmul.f32.gmra.mxu0 %v801
        %v1632 = vpop.f32.mrf.mxu0
        %v1633 = vadd.f32 %v1541, %v1632
        %1634 = vmatmul.f32.gmra.mxu0 %v812
        %v1635 = vpop.f32.mrf.mxu0
        %v1636 = vadd.f32 %v1544, %v1635
        %1637 = vmatmul.f32.gmra.mxu0 %v823
        %v1638 = vpop.f32.mrf.mxu0
        %v1639 = vadd.f32 %v1547, %v1638
        %1640 = vmatmul.f32.gmra.mxu0 %v834
        %v1641 = vpop.f32.mrf.mxu0
        %v1642 = vadd.f32 %v1550, %v1641
        %1643 = vmatmul.f32.gmra.mxu0 %v845
        %v1644 = vpop.f32.mrf.mxu0
        %v1645 = vadd.f32 %v1553, %v1644
        %1646 = vdwg.mxu0
        %1647 = vmatpush.msra.mxu0 %v962
        %1648 = vmatpush.msra.mxu0 %v961
        %1649 = vmatpush.msra.mxu0 %v960
        %1650 = vmatpush.msra.mxu0 %v959
        %1651 = vmatpush.msra.mxu0 %v958
        %1652 = vmatpush.msra.mxu0 %v957
        %1653 = vmatpush.msra.mxu0 %v956
        %1654 = vmatpush.msra.mxu0 %v955
        %1655 = vmatpush.msra.mxu0 %v954
        %1656 = vmatpush.msra.mxu0 %v953
        %1657 = vmatpush.msra.mxu0 %v952
        %1658 = vmatpush.msra.mxu0 %v951
        %1659 = vmatpush.msra.mxu0 %v950
        %1660 = vmatpush.msra.mxu0 %v949
        %1661 = vmatpush.msra.mxu0 %v948
        %1662 = vmatpush.msra.mxu0 %v947
        %1663 = vmatmul.f32.gmra.mxu0 %v582
        %v1664 = vpop.f32.mrf.mxu0
        %v1665 = vadd.f32 %v1573, %v1664
        %1666 = vmatmul.f32.gmra.mxu0 %v593
        %v1667 = vpop.f32.mrf.mxu0
        %v1668 = vadd.f32 %v1576, %v1667
        %1669 = vmatmul.f32.gmra.mxu0 %v604
        %v1670 = vpop.f32.mrf.mxu0
        %v1671 = vadd.f32 %v1579, %v1670
        %1672 = vmatmul.f32.gmra.mxu0 %v615
        %v1673 = vpop.f32.mrf.mxu0
        %v1674 = vadd.f32 %v1582, %v1673
        %1675 = vmatmul.f32.gmra.mxu0 %v626
        %v1676 = vpop.f32.mrf.mxu0
        %v1677 = vadd.f32 %v1585, %v1676
        %1678 = vmatmul.f32.gmra.mxu0 %v637
        %v1679 = vpop.f32.mrf.mxu0
        %v1680 = vadd.f32 %v1588, %v1679
        %1681 = vmatmul.f32.gmra.mxu0 %v648
        %v1682 = vpop.f32.mrf.mxu0
        %v1683 = vadd.f32 %v1591, %v1682
        %1684 = vmatmul.f32.gmra.mxu0 %v659
        %v1685 = vpop.f32.mrf.mxu0
        %v1686 = vadd.f32 %v1594, %v1685
        %1687 = vmatmul.f32.gmra.mxu0 %v670
        %v1688 = vpop.f32.mrf.mxu0
        %v1689 = vadd.f32 %v1597, %v1688
        %1690 = vmatmul.f32.gmra.mxu0 %v681
        %v1691 = vpop.f32.mrf.mxu0
        %v1692 = vadd.f32 %v1600, %v1691
        %1693 = vmatmul.f32.gmra.mxu0 %v692
        %v1694 = vpop.f32.mrf.mxu0
        %v1695 = vadd.f32 %v1603, %v1694
        %1696 = vmatmul.f32.gmra.mxu0 %v703
        %v1697 = vpop.f32.mrf.mxu0
        %v1698 = vadd.f32 %v1606, %v1697
        %1699 = vmatmul.f32.gmra.mxu0 %v714
        %v1700 = vpop.f32.mrf.mxu0
        %v1701 = vadd.f32 %v1609, %v1700
        %1702 = vmatmul.f32.gmra.mxu0 %v725
        %v1703 = vpop.f32.mrf.mxu0
        %v1704 = vadd.f32 %v1612, %v1703
        %1705 = vmatmul.f32.gmra.mxu0 %v736
        %v1706 = vpop.f32.mrf.mxu0
        %v1707 = vadd.f32 %v1615, %v1706
        %1708 = vmatmul.f32.gmra.mxu0 %v747
        %v1709 = vpop.f32.mrf.mxu0
        %v1710 = vadd.f32 %v1618, %v1709
        %1711 = vmatmul.f32.gmra.mxu0 %v758
        %v1712 = vpop.f32.mrf.mxu0
        %v1713 = vadd.f32 %v1621, %v1712
        %1714 = vmatmul.f32.gmra.mxu0 %v769
        %v1715 = vpop.f32.mrf.mxu0
        %v1716 = vadd.f32 %v1624, %v1715
        %1717 = vmatmul.f32.gmra.mxu0 %v780
        %v1718 = vpop.f32.mrf.mxu0
        %v1719 = vadd.f32 %v1627, %v1718
        %1720 = vmatmul.f32.gmra.mxu0 %v791
        %v1721 = vpop.f32.mrf.mxu0
        %v1722 = vadd.f32 %v1630, %v1721
        %1723 = vmatmul.f32.gmra.mxu0 %v802
        %v1724 = vpop.f32.mrf.mxu0
        %v1725 = vadd.f32 %v1633, %v1724
        %1726 = vmatmul.f32.gmra.mxu0 %v813
        %v1727 = vpop.f32.mrf.mxu0
        %v1728 = vadd.f32 %v1636, %v1727
        %1729 = vmatmul.f32.gmra.mxu0 %v824
        %v1730 = vpop.f32.mrf.mxu0
        %v1731 = vadd.f32 %v1639, %v1730
        %1732 = vmatmul.f32.gmra.mxu0 %v835
        %v1733 = vpop.f32.mrf.mxu0
        %v1734 = vadd.f32 %v1642, %v1733
        %1735 = vmatmul.f32.gmra.mxu0 %v846
        %v1736 = vpop.f32.mrf.mxu0
        %v1737 = vadd.f32 %v1645, %v1736
        %1738 = vdwg.mxu0
        %1739 = vmatpush.msra.mxu0 %v978
        %1740 = vmatpush.msra.mxu0 %v977
        %1741 = vmatpush.msra.mxu0 %v976
        %1742 = vmatpush.msra.mxu0 %v975
        %1743 = vmatpush.msra.mxu0 %v974
        %1744 = vmatpush.msra.mxu0 %v973
        %1745 = vmatpush.msra.mxu0 %v972
        %1746 = vmatpush.msra.mxu0 %v971
        %1747 = vmatpush.msra.mxu0 %v970
        %1748 = vmatpush.msra.mxu0 %v969
        %1749 = vmatpush.msra.mxu0 %v968
        %1750 = vmatpush.msra.mxu0 %v967
        %1751 = vmatpush.msra.mxu0 %v966
        %1752 = vmatpush.msra.mxu0 %v965
        %1753 = vmatpush.msra.mxu0 %v964
        %1754 = vmatpush.msra.mxu0 %v963
        %1755 = vmatmul.f32.gmra.mxu0 %v583
        %v1756 = vpop.f32.mrf.mxu0
        %v1757 = vadd.f32 %v1665, %v1756
        %1758 = vmatmul.f32.gmra.mxu0 %v594
        %v1759 = vpop.f32.mrf.mxu0
        %v1760 = vadd.f32 %v1668, %v1759
        %1761 = vmatmul.f32.gmra.mxu0 %v605
        %v1762 = vpop.f32.mrf.mxu0
        %v1763 = vadd.f32 %v1671, %v1762
        %1764 = vmatmul.f32.gmra.mxu0 %v616
        %v1765 = vpop.f32.mrf.mxu0
        %v1766 = vadd.f32 %v1674, %v1765
        %1767 = vmatmul.f32.gmra.mxu0 %v627
        %v1768 = vpop.f32.mrf.mxu0
        %v1769 = vadd.f32 %v1677, %v1768
        %1770 = vmatmul.f32.gmra.mxu0 %v638
        %v1771 = vpop.f32.mrf.mxu0
        %v1772 = vadd.f32 %v1680, %v1771
        %1773 = vmatmul.f32.gmra.mxu0 %v649
        %v1774 = vpop.f32.mrf.mxu0
        %v1775 = vadd.f32 %v1683, %v1774
        %1776 = vmatmul.f32.gmra.mxu0 %v660
        %v1777 = vpop.f32.mrf.mxu0
        %v1778 = vadd.f32 %v1686, %v1777
        %1779 = vmatmul.f32.gmra.mxu0 %v671
        %v1780 = vpop.f32.mrf.mxu0
        %v1781 = vadd.f32 %v1689, %v1780
        %1782 = vmatmul.f32.gmra.mxu0 %v682
        %v1783 = vpop.f32.mrf.mxu0
        %v1784 = vadd.f32 %v1692, %v1783
        %1785 = vmatmul.f32.gmra.mxu0 %v693
        %v1786 = vpop.f32.mrf.mxu0
        %v1787 = vadd.f32 %v1695, %v1786
        %1788 = vmatmul.f32.gmra.mxu0 %v704
        %v1789 = vpop.f32.mrf.mxu0
        %v1790 = vadd.f32 %v1698, %v1789
        %1791 = vmatmul.f32.gmra.mxu0 %v715
        %v1792 = vpop.f32.mrf.mxu0
        %v1793 = vadd.f32 %v1701, %v1792
        %1794 = vmatmul.f32.gmra.mxu0 %v726
        %v1795 = vpop.f32.mrf.mxu0
        %v1796 = vadd.f32 %v1704, %v1795
        %1797 = vmatmul.f32.gmra.mxu0 %v737
        %v1798 = vpop.f32.mrf.mxu0
        %v1799 = vadd.f32 %v1707, %v1798
        %1800 = vmatmul.f32.gmra.mxu0 %v748
        %v1801 = vpop.f32.mrf.mxu0
        %v1802 = vadd.f32 %v1710, %v1801
        %1803 = vmatmul.f32.gmra.mxu0 %v759
        %v1804 = vpop.f32.mrf.mxu0
        %v1805 = vadd.f32 %v1713, %v1804
        %1806 = vmatmul.f32.gmra.mxu0 %v770
        %v1807 = vpop.f32.mrf.mxu0
        %v1808 = vadd.f32 %v1716, %v1807
        %1809 = vmatmul.f32.gmra.mxu0 %v781
        %v1810 = vpop.f32.mrf.mxu0
        %v1811 = vadd.f32 %v1719, %v1810
        %1812 = vmatmul.f32.gmra.mxu0 %v792
        %v1813 = vpop.f32.mrf.mxu0
        %v1814 = vadd.f32 %v1722, %v1813
        %1815 = vmatmul.f32.gmra.mxu0 %v803
        %v1816 = vpop.f32.mrf.mxu0
        %v1817 = vadd.f32 %v1725, %v1816
        %1818 = vmatmul.f32.gmra.mxu0 %v814
        %v1819 = vpop.f32.mrf.mxu0
        %v1820 = vadd.f32 %v1728, %v1819
        %1821 = vmatmul.f32.gmra.mxu0 %v825
        %v1822 = vpop.f32.mrf.mxu0
        %v1823 = vadd.f32 %v1731, %v1822
        %1824 = vmatmul.f32.gmra.mxu0 %v836
        %v1825 = vpop.f32.mrf.mxu0
        %v1826 = vadd.f32 %v1734, %v1825
        %1827 = vmatmul.f32.gmra.mxu0 %v847
        %v1828 = vpop.f32.mrf.mxu0
        %v1829 = vadd.f32 %v1737, %v1828
        %1830 = vdwg.mxu0
        %1831 = vmatpush.msra.mxu0 %v994
        %1832 = vmatpush.msra.mxu0 %v993
        %1833 = vmatpush.msra.mxu0 %v992
        %1834 = vmatpush.msra.mxu0 %v991
        %1835 = vmatpush.msra.mxu0 %v990
        %1836 = vmatpush.msra.mxu0 %v989
        %1837 = vmatpush.msra.mxu0 %v988
        %1838 = vmatpush.msra.mxu0 %v987
        %1839 = vmatpush.msra.mxu0 %v986
        %1840 = vmatpush.msra.mxu0 %v985
        %1841 = vmatpush.msra.mxu0 %v984
        %1842 = vmatpush.msra.mxu0 %v983
        %1843 = vmatpush.msra.mxu0 %v982
        %1844 = vmatpush.msra.mxu0 %v981
        %1845 = vmatpush.msra.mxu0 %v980
        %1846 = vmatpush.msra.mxu0 %v979
        %1847 = vmatmul.f32.gmra.mxu0 %v584
        %v1848 = vpop.f32.mrf.mxu0
        %v1849 = vadd.f32 %v1757, %v1848
        %1850 = vmatmul.f32.gmra.mxu0 %v595
        %v1851 = vpop.f32.mrf.mxu0
        %v1852 = vadd.f32 %v1760, %v1851
        %1853 = vmatmul.f32.gmra.mxu0 %v606
        %v1854 = vpop.f32.mrf.mxu0
        %v1855 = vadd.f32 %v1763, %v1854
        %1856 = vmatmul.f32.gmra.mxu0 %v617
        %v1857 = vpop.f32.mrf.mxu0
        %v1858 = vadd.f32 %v1766, %v1857
        %1859 = vmatmul.f32.gmra.mxu0 %v628
        %v1860 = vpop.f32.mrf.mxu0
        %v1861 = vadd.f32 %v1769, %v1860
        %1862 = vmatmul.f32.gmra.mxu0 %v639
        %v1863 = vpop.f32.mrf.mxu0
        %v1864 = vadd.f32 %v1772, %v1863
        %1865 = vmatmul.f32.gmra.mxu0 %v650
        %v1866 = vpop.f32.mrf.mxu0
        %v1867 = vadd.f32 %v1775, %v1866
        %1868 = vmatmul.f32.gmra.mxu0 %v661
        %v1869 = vpop.f32.mrf.mxu0
        %v1870 = vadd.f32 %v1778, %v1869
        %1871 = vmatmul.f32.gmra.mxu0 %v672
        %v1872 = vpop.f32.mrf.mxu0
        %v1873 = vadd.f32 %v1781, %v1872
        %1874 = vmatmul.f32.gmra.mxu0 %v683
        %v1875 = vpop.f32.mrf.mxu0
        %v1876 = vadd.f32 %v1784, %v1875
        %1877 = vmatmul.f32.gmra.mxu0 %v694
        %v1878 = vpop.f32.mrf.mxu0
        %v1879 = vadd.f32 %v1787, %v1878
        %1880 = vmatmul.f32.gmra.mxu0 %v705
        %v1881 = vpop.f32.mrf.mxu0
        %v1882 = vadd.f32 %v1790, %v1881
        %1883 = vmatmul.f32.gmra.mxu0 %v716
        %v1884 = vpop.f32.mrf.mxu0
        %v1885 = vadd.f32 %v1793, %v1884
        %1886 = vmatmul.f32.gmra.mxu0 %v727
        %v1887 = vpop.f32.mrf.mxu0
        %v1888 = vadd.f32 %v1796, %v1887
        %1889 = vmatmul.f32.gmra.mxu0 %v738
        %v1890 = vpop.f32.mrf.mxu0
        %v1891 = vadd.f32 %v1799, %v1890
        %1892 = vmatmul.f32.gmra.mxu0 %v749
        %v1893 = vpop.f32.mrf.mxu0
        %v1894 = vadd.f32 %v1802, %v1893
        %1895 = vmatmul.f32.gmra.mxu0 %v760
        %v1896 = vpop.f32.mrf.mxu0
        %v1897 = vadd.f32 %v1805, %v1896
        %1898 = vmatmul.f32.gmra.mxu0 %v771
        %v1899 = vpop.f32.mrf.mxu0
        %v1900 = vadd.f32 %v1808, %v1899
        %1901 = vmatmul.f32.gmra.mxu0 %v782
        %v1902 = vpop.f32.mrf.mxu0
        %v1903 = vadd.f32 %v1811, %v1902
        %1904 = vmatmul.f32.gmra.mxu0 %v793
        %v1905 = vpop.f32.mrf.mxu0
        %v1906 = vadd.f32 %v1814, %v1905
        %1907 = vmatmul.f32.gmra.mxu0 %v804
        %v1908 = vpop.f32.mrf.mxu0
        %v1909 = vadd.f32 %v1817, %v1908
        %1910 = vmatmul.f32.gmra.mxu0 %v815
        %v1911 = vpop.f32.mrf.mxu0
        %v1912 = vadd.f32 %v1820, %v1911
        %1913 = vmatmul.f32.gmra.mxu0 %v826
        %v1914 = vpop.f32.mrf.mxu0
        %v1915 = vadd.f32 %v1823, %v1914
        %1916 = vmatmul.f32.gmra.mxu0 %v837
        %v1917 = vpop.f32.mrf.mxu0
        %v1918 = vadd.f32 %v1826, %v1917
        %1919 = vmatmul.f32.gmra.mxu0 %v848
        %v1920 = vpop.f32.mrf.mxu0
        %v1921 = vadd.f32 %v1829, %v1920
        %1922 = vdwg.mxu0
        %1923 = vmatpush.msra.mxu0 %v1010
        %1924 = vmatpush.msra.mxu0 %v1009
        %1925 = vmatpush.msra.mxu0 %v1008
        %1926 = vmatpush.msra.mxu0 %v1007
        %1927 = vmatpush.msra.mxu0 %v1006
        %1928 = vmatpush.msra.mxu0 %v1005
        %1929 = vmatpush.msra.mxu0 %v1004
        %1930 = vmatpush.msra.mxu0 %v1003
        %1931 = vmatpush.msra.mxu0 %v1002
        %1932 = vmatpush.msra.mxu0 %v1001
        %1933 = vmatpush.msra.mxu0 %v1000
        %1934 = vmatpush.msra.mxu0 %v999
        %1935 = vmatpush.msra.mxu0 %v998
        %1936 = vmatpush.msra.mxu0 %v997
        %1937 = vmatpush.msra.mxu0 %v996
        %1938 = vmatpush.msra.mxu0 %v995
        %1939 = vmatmul.f32.gmra.mxu0 %v585
        %v1940 = vpop.f32.mrf.mxu0
        %v1941 = vadd.f32 %v1849, %v1940
        %1942 = vmatmul.f32.gmra.mxu0 %v596
        %v1943 = vpop.f32.mrf.mxu0
        %v1944 = vadd.f32 %v1852, %v1943
        %1945 = vmatmul.f32.gmra.mxu0 %v607
        %v1946 = vpop.f32.mrf.mxu0
        %v1947 = vadd.f32 %v1855, %v1946
        %1948 = vmatmul.f32.gmra.mxu0 %v618
        %v1949 = vpop.f32.mrf.mxu0
        %v1950 = vadd.f32 %v1858, %v1949
        %1951 = vmatmul.f32.gmra.mxu0 %v629
        %v1952 = vpop.f32.mrf.mxu0
        %v1953 = vadd.f32 %v1861, %v1952
        %1954 = vmatmul.f32.gmra.mxu0 %v640
        %v1955 = vpop.f32.mrf.mxu0
        %v1956 = vadd.f32 %v1864, %v1955
        %1957 = vmatmul.f32.gmra.mxu0 %v651
        %v1958 = vpop.f32.mrf.mxu0
        %v1959 = vadd.f32 %v1867, %v1958
        %1960 = vmatmul.f32.gmra.mxu0 %v662
        %v1961 = vpop.f32.mrf.mxu0
        %v1962 = vadd.f32 %v1870, %v1961
        %1963 = vmatmul.f32.gmra.mxu0 %v673
        %v1964 = vpop.f32.mrf.mxu0
        %v1965 = vadd.f32 %v1873, %v1964
        %1966 = vmatmul.f32.gmra.mxu0 %v684
        %v1967 = vpop.f32.mrf.mxu0
        %v1968 = vadd.f32 %v1876, %v1967
        %1969 = vmatmul.f32.gmra.mxu0 %v695
        %v1970 = vpop.f32.mrf.mxu0
        %v1971 = vadd.f32 %v1879, %v1970
        %1972 = vmatmul.f32.gmra.mxu0 %v706
        %v1973 = vpop.f32.mrf.mxu0
        %v1974 = vadd.f32 %v1882, %v1973
        %1975 = vmatmul.f32.gmra.mxu0 %v717
        %v1976 = vpop.f32.mrf.mxu0
        %v1977 = vadd.f32 %v1885, %v1976
        %1978 = vmatmul.f32.gmra.mxu0 %v728
        %v1979 = vpop.f32.mrf.mxu0
        %v1980 = vadd.f32 %v1888, %v1979
        %1981 = vmatmul.f32.gmra.mxu0 %v739
        %v1982 = vpop.f32.mrf.mxu0
        %v1983 = vadd.f32 %v1891, %v1982
        %1984 = vmatmul.f32.gmra.mxu0 %v750
        %v1985 = vpop.f32.mrf.mxu0
        %v1986 = vadd.f32 %v1894, %v1985
        %1987 = vmatmul.f32.gmra.mxu0 %v761
        %v1988 = vpop.f32.mrf.mxu0
        %v1989 = vadd.f32 %v1897, %v1988
        %1990 = vmatmul.f32.gmra.mxu0 %v772
        %v1991 = vpop.f32.mrf.mxu0
        %v1992 = vadd.f32 %v1900, %v1991
        %1993 = vmatmul.f32.gmra.mxu0 %v783
        %v1994 = vpop.f32.mrf.mxu0
        %v1995 = vadd.f32 %v1903, %v1994
        %1996 = vmatmul.f32.gmra.mxu0 %v794
        %v1997 = vpop.f32.mrf.mxu0
        %v1998 = vadd.f32 %v1906, %v1997
        %1999 = vmatmul.f32.gmra.mxu0 %v805
        %v2000 = vpop.f32.mrf.mxu0
        %v2001 = vadd.f32 %v1909, %v2000
        %2002 = vmatmul.f32.gmra.mxu0 %v816
        %v2003 = vpop.f32.mrf.mxu0
        %v2004 = vadd.f32 %v1912, %v2003
        %2005 = vmatmul.f32.gmra.mxu0 %v827
        %v2006 = vpop.f32.mrf.mxu0
        %v2007 = vadd.f32 %v1915, %v2006
        %2008 = vmatmul.f32.gmra.mxu0 %v838
        %v2009 = vpop.f32.mrf.mxu0
        %v2010 = vadd.f32 %v1918, %v2009
        %2011 = vmatmul.f32.gmra.mxu0 %v849
        %v2012 = vpop.f32.mrf.mxu0
        %v2013 = vadd.f32 %v1921, %v2012
        %2014 = vdwg.mxu0
        %2015 = vmatpush.msra.mxu0 0.0
        %2016 = vmatpush.msra.mxu0 0.0
        %2017 = vmatpush.msra.mxu0 0.0
        %2018 = vmatpush.msra.mxu0 0.0
        %2019 = vmatpush.msra.mxu0 0.0
        %2020 = vmatpush.msra.mxu0 0.0
        %2021 = vmatpush.msra.mxu0 0.0
        %2022 = vmatpush.msra.mxu0 0.0
        %2023 = vmatpush.msra.mxu0 %v1018
        %2024 = vmatpush.msra.mxu0 %v1017
        %2025 = vmatpush.msra.mxu0 %v1016
        %2026 = vmatpush.msra.mxu0 %v1015
        %2027 = vmatpush.msra.mxu0 %v1014
        %2028 = vmatpush.msra.mxu0 %v1013
        %2029 = vmatpush.msra.mxu0 %v1012
        %2030 = vmatpush.msra.mxu0 %v1011
        %2031 = vmatmul.f32.gmra.mxu0 %v1021
        %v2032 = vpop.f32.mrf.mxu0
        %v2033 = vadd.f32 %v1941, %v2032
        %2034 = vmatmul.f32.gmra.mxu0 %v1024
        %v2035 = vpop.f32.mrf.mxu0
        %v2036 = vadd.f32 %v1944, %v2035
        %2037 = vmatmul.f32.gmra.mxu0 %v1027
        %v2038 = vpop.f32.mrf.mxu0
        %v2039 = vadd.f32 %v1947, %v2038
        %2040 = vmatmul.f32.gmra.mxu0 %v1030
        %v2041 = vpop.f32.mrf.mxu0
        %v2042 = vadd.f32 %v1950, %v2041
        %2043 = vmatmul.f32.gmra.mxu0 %v1033
        %v2044 = vpop.f32.mrf.mxu0
        %v2045 = vadd.f32 %v1953, %v2044
        %2046 = vmatmul.f32.gmra.mxu0 %v1036
        %v2047 = vpop.f32.mrf.mxu0
        %v2048 = vadd.f32 %v1956, %v2047
        %2049 = vmatmul.f32.gmra.mxu0 %v1039
        %v2050 = vpop.f32.mrf.mxu0
        %v2051 = vadd.f32 %v1959, %v2050
        %2052 = vmatmul.f32.gmra.mxu0 %v1042
        %v2053 = vpop.f32.mrf.mxu0
        %v2054 = vadd.f32 %v1962, %v2053
        %2055 = vmatmul.f32.gmra.mxu0 %v1045
        %v2056 = vpop.f32.mrf.mxu0
        %v2057 = vadd.f32 %v1965, %v2056
        %2058 = vmatmul.f32.gmra.mxu0 %v1048
        %v2059 = vpop.f32.mrf.mxu0
        %v2060 = vadd.f32 %v1968, %v2059
        %2061 = vmatmul.f32.gmra.mxu0 %v1051
        %v2062 = vpop.f32.mrf.mxu0
        %v2063 = vadd.f32 %v1971, %v2062
        %2064 = vmatmul.f32.gmra.mxu0 %v1054
        %v2065 = vpop.f32.mrf.mxu0
        %v2066 = vadd.f32 %v1974, %v2065
        %2067 = vmatmul.f32.gmra.mxu0 %v1057
        %v2068 = vpop.f32.mrf.mxu0
        %v2069 = vadd.f32 %v1977, %v2068
        %2070 = vmatmul.f32.gmra.mxu0 %v1060
        %v2071 = vpop.f32.mrf.mxu0
        %v2072 = vadd.f32 %v1980, %v2071
        %2073 = vmatmul.f32.gmra.mxu0 %v1063
        %v2074 = vpop.f32.mrf.mxu0
        %v2075 = vadd.f32 %v1983, %v2074
        %2076 = vmatmul.f32.gmra.mxu0 %v1066
        %v2077 = vpop.f32.mrf.mxu0
        %v2078 = vadd.f32 %v1986, %v2077
        %2079 = vmatmul.f32.gmra.mxu0 %v1069
        %v2080 = vpop.f32.mrf.mxu0
        %v2081 = vadd.f32 %v1989, %v2080
        %2082 = vmatmul.f32.gmra.mxu0 %v1072
        %v2083 = vpop.f32.mrf.mxu0
        %v2084 = vadd.f32 %v1992, %v2083
        %2085 = vmatmul.f32.gmra.mxu0 %v1075
        %v2086 = vpop.f32.mrf.mxu0
        %v2087 = vadd.f32 %v1995, %v2086
        %2088 = vmatmul.f32.gmra.mxu0 %v1078
        %v2089 = vpop.f32.mrf.mxu0
        %v2090 = vadd.f32 %v1998, %v2089
        %2091 = vmatmul.f32.gmra.mxu0 %v1081
        %v2092 = vpop.f32.mrf.mxu0
        %v2093 = vadd.f32 %v2001, %v2092
        %2094 = vmatmul.f32.gmra.mxu0 %v1084
        %v2095 = vpop.f32.mrf.mxu0
        %v2096 = vadd.f32 %v2004, %v2095
        %2097 = vmatmul.f32.gmra.mxu0 %v1087
        %v2098 = vpop.f32.mrf.mxu0
        %v2099 = vadd.f32 %v2007, %v2098
        %2100 = vmatmul.f32.gmra.mxu0 %v1090
        %v2101 = vpop.f32.mrf.mxu0
        %v2102 = vadd.f32 %v2010, %v2101
        %2103 = vmatmul.f32.gmra.mxu0 %v1093
        %v2104 = vpop.f32.mrf.mxu0
        %v2105 = vadd.f32 %v2013, %v2104
        %2106 = vdwg.mxu0
        %v2107 = vadd.f32 %v2033, %v2036
        %v2108 = vadd.f32 %v2107, %v2039
        %v2109 = vadd.f32 %v2108, %v2042
        %v2110 = vadd.f32 %v2109, %v2045
        %v2111 = vadd.f32 %v2110, %v2048
        %v2112 = vadd.f32 %v2111, %v2051
        %v2113 = vadd.f32 %v2112, %v2054
        %v2114 = vadd.f32 %v2113, %v2057
        %v2115 = vadd.f32 %v2114, %v2060
        %v2116 = vadd.f32 %v2115, %v2063
        %v2117 = vadd.f32 %v2116, %v2066
        %v2118 = vadd.f32 %v2117, %v2069
        %v2119 = vadd.f32 %v2118, %v2072
        %v2120 = vadd.f32 %v2119, %v2075
        %v2121 = vadd.f32 %v2120, %v2078
        %v2122 = vadd.f32 %v2121, %v2081
        %v2123 = vadd.f32 %v2122, %v2084
        %v2124 = vadd.f32 %v2123, %v2087
        %v2125 = vadd.f32 %v2124, %v2090
        %v2126 = vadd.f32 %v2125, %v2093
        %v2127 = vadd.f32 %v2126, %v2096
        %v2128 = vadd.f32 %v2127, %v2099
        %v2129 = vadd.f32 %v2128, %v2102
        %vm2130 = vcmask 1043456
        %v2131 = vsel %vm2130, %v2105, 0.0
        %v2132 = vadd.f32 %v2129, %v2131
        %v2133 = vrot.slane %v2132, 4
        %v2134 = vadd.f32 %v2132, %v2133
        %v2135 = vrot.slane %v2134, 2
        %v2136 = vadd.f32 %v2134, %v2135
        %v2137 = vrot.slane %v2136, 1
        %v2138 = vadd.f32 %v2136, %v2137
        %v2139 = vmul.f32 %v2033, %v2033
        %v2140 = vmul.f32 %v2036, %v2036
        %v2141 = vmul.f32 %v2039, %v2039
        %v2142 = vmul.f32 %v2042, %v2042
        %v2143 = vmul.f32 %v2045, %v2045
        %v2144 = vmul.f32 %v2048, %v2048
        %v2145 = vmul.f32 %v2051, %v2051
        %v2146 = vmul.f32 %v2054, %v2054
        %v2147 = vmul.f32 %v2057, %v2057
        %v2148 = vmul.f32 %v2060, %v2060
        %v2149 = vmul.f32 %v2063, %v2063
        %v2150 = vmul.f32 %v2066, %v2066
        %v2151 = vmul.f32 %v2069, %v2069
        %v2152 = vmul.f32 %v2072, %v2072
        %v2153 = vmul.f32 %v2075, %v2075
        %v2154 = vmul.f32 %v2078, %v2078
        %v2155 = vmul.f32 %v2081, %v2081
        %v2156 = vmul.f32 %v2084, %v2084
        %v2157 = vmul.f32 %v2087, %v2087
        %v2158 = vmul.f32 %v2090, %v2090
        %v2159 = vmul.f32 %v2093, %v2093
        %v2160 = vmul.f32 %v2096, %v2096
        %v2161 = vmul.f32 %v2099, %v2099
        %v2162 = vmul.f32 %v2102, %v2102
        %v2163 = vmul.f32 %v2105, %v2105
        %v2164 = vadd.f32 %v2139, %v2140
        %v2165 = vadd.f32 %v2164, %v2141
        %v2166 = vadd.f32 %v2165, %v2142
        %v2167 = vadd.f32 %v2166, %v2143
        %v2168 = vadd.f32 %v2167, %v2144
        %v2169 = vadd.f32 %v2168, %v2145
        %v2170 = vadd.f32 %v2169, %v2146
        %v2171 = vadd.f32 %v2170, %v2147
        %v2172 = vadd.f32 %v2171, %v2148
        %v2173 = vadd.f32 %v2172, %v2149
        %v2174 = vadd.f32 %v2173, %v2150
        %v2175 = vadd.f32 %v2174, %v2151
        %v2176 = vadd.f32 %v2175, %v2152
        %v2177 = vadd.f32 %v2176, %v2153
        %v2178 = vadd.f32 %v2177, %v2154
        %v2179 = vadd.f32 %v2178, %v2155
        %v2180 = vadd.f32 %v2179, %v2156
        %v2181 = vadd.f32 %v2180, %v2157
        %v2182 = vadd.f32 %v2181, %v2158
        %v2183 = vadd.f32 %v2182, %v2159
        %v2184 = vadd.f32 %v2183, %v2160
        %v2185 = vadd.f32 %v2184, %v2161
        %v2186 = vadd.f32 %v2185, %v2162
        %v2187 = vsel %vm2130, %v2163, 0.0
        %v2188 = vadd.f32 %v2186, %v2187
        %v2189 = vrot.slane %v2188, 4
        %v2190 = vadd.f32 %v2188, %v2189
        %v2191 = vrot.slane %v2190, 2
        %v2192 = vadd.f32 %v2190, %v2191
        %v2193 = vrot.slane %v2192, 1
        %v2194 = vadd.f32 %v2192, %v2193
        %v2195 = vmul.f32 %v2138, 0.0051020407
        %v2196 = vmul.f32 %v2194, 0.0051020407
        %v2197 = vmul.f32 %v2195, %v2195
        %v2198 = vsub.f32 %v2196, %v2197
        %v2199 = vld [vmem:[%s258] sm:$0x1]
        %v2200 = vadd.f32 %v2198, 1e-05
        %v2201 = vrsqrt.pop %v2200
        %v2202 = vmul.f32 %v2201, %v2200
        %v2203 = vmul.f32 %v2202, %v2201
        %v2204 = vmul.f32 0.5, %v2203
        %v2205 = vsub.f32 1.5, %v2204
        %v2206 = vmul.f32 %v2201, %v2205
        %vm2207 = vweird.f32 %v2200
        %vm2208 = vweird.f32 %v2201
        %vm2209 = vmor %vm2207, %vm2208
        %v2210 = vsel %vm2209, %v2201, %v2206
        %v2211 = vmul.f32 %v2199, %v2210
        %v2212 = vld [vmem:[%s267] sm:$0x1]
        %v2213 = vmul.f32 %v2195, %v2211
        %v2214 = vsub.f32 %v2212, %v2213
        %v2216 = vperm.slane %v2211, 0
        %v2218 = vmul.f32 %v2033, %v2216
        %v2219 = vmul.f32 %v2036, %v2216
        %v2220 = vmul.f32 %v2039, %v2216
        %v2221 = vmul.f32 %v2042, %v2216
        %v2222 = vmul.f32 %v2045, %v2216
        %v2223 = vmul.f32 %v2048, %v2216
        %v2224 = vmul.f32 %v2051, %v2216
        %v2225 = vmul.f32 %v2054, %v2216
        %v2226 = vmul.f32 %v2057, %v2216
        %v2227 = vmul.f32 %v2060, %v2216
        %v2228 = vmul.f32 %v2063, %v2216
        %v2229 = vmul.f32 %v2066, %v2216
        %v2230 = vmul.f32 %v2069, %v2216
        %v2231 = vmul.f32 %v2072, %v2216
        %v2232 = vmul.f32 %v2075, %v2216
        %v2233 = vmul.f32 %v2078, %v2216
        %v2234 = vmul.f32 %v2081, %v2216
        %v2235 = vmul.f32 %v2084, %v2216
        %v2236 = vmul.f32 %v2087, %v2216
        %v2237 = vmul.f32 %v2090, %v2216
        %v2238 = vmul.f32 %v2093, %v2216
        %v2239 = vmul.f32 %v2096, %v2216
        %v2240 = vmul.f32 %v2099, %v2216
        %v2241 = vmul.f32 %v2102, %v2216
        %v2242 = vmul.f32 %v2105, %v2216
        %v2244 = vperm.slane %v2214, 0
        %v2246 = vadd.f32 %v2218, %v2244
        %v2247 = vadd.f32 %v2219, %v2244
        %v2248 = vadd.f32 %v2220, %v2244
        %v2249 = vadd.f32 %v2221, %v2244
        %v2250 = vadd.f32 %v2222, %v2244
        %v2251 = vadd.f32 %v2223, %v2244
        %v2252 = vadd.f32 %v2224, %v2244
        %v2253 = vadd.f32 %v2225, %v2244
        %v2254 = vadd.f32 %v2226, %v2244
        %v2255 = vadd.f32 %v2227, %v2244
        %v2256 = vadd.f32 %v2228, %v2244
        %v2257 = vadd.f32 %v2229, %v2244
        %v2258 = vadd.f32 %v2230, %v2244
        %v2259 = vadd.f32 %v2231, %v2244
        %v2260 = vadd.f32 %v2232, %v2244
        %v2261 = vadd.f32 %v2233, %v2244
        %v2262 = vadd.f32 %v2234, %v2244
        %v2263 = vadd.f32 %v2235, %v2244
        %v2264 = vadd.f32 %v2236, %v2244
        %v2265 = vadd.f32 %v2237, %v2244
        %v2266 = vadd.f32 %v2238, %v2244
        %v2267 = vadd.f32 %v2239, %v2244
        %v2268 = vadd.f32 %v2240, %v2244
        %v2269 = vadd.f32 %v2241, %v2244
        %v2270 = vadd.f32 %v2242, %v2244
        %v2271 = vmax.f32 %v2246, 0.0
        %v2272 = vmax.f32 %v2247, 0.0
        %v2273 = vmax.f32 %v2248, 0.0
        %v2274 = vmax.f32 %v2249, 0.0
        %v2275 = vmax.f32 %v2250, 0.0
        %v2276 = vmax.f32 %v2251, 0.0
        %v2277 = vmax.f32 %v2252, 0.0
        %v2278 = vmax.f32 %v2253, 0.0
        %v2279 = vmax.f32 %v2254, 0.0
        %v2280 = vmax.f32 %v2255, 0.0
        %v2281 = vmax.f32 %v2256, 0.0
        %v2282 = vmax.f32 %v2257, 0.0
        %v2283 = vmax.f32 %v2258, 0.0
        %v2284 = vmax.f32 %v2259, 0.0
        %v2285 = vmax.f32 %v2260, 0.0
        %v2286 = vmax.f32 %v2261, 0.0
        %v2287 = vmax.f32 %v2262, 0.0
        %v2288 = vmax.f32 %v2263, 0.0
        %v2289 = vmax.f32 %v2264, 0.0
        %v2290 = vmax.f32 %v2265, 0.0
        %v2291 = vmax.f32 %v2266, 0.0
        %v2292 = vmax.f32 %v2267, 0.0
        %v2293 = vmax.f32 %v2268, 0.0
        %v2294 = vmax.f32 %v2269, 0.0
        %v2295 = vmax.f32 %v2270, 0.0
        %2296 = vst [vmem:[%s300] sm:$0xff] %v2271
        %2297 = vst [vmem:[%s300 + $0x8] sm:$0xff] %v2272
        %2298 = vst [vmem:[%s300 + $0x10] sm:$0xff] %v2273
        %2299 = vst [vmem:[%s300 + $0x18] sm:$0xff] %v2274
        %2300 = vst [vmem:[%s300 + $0x20] sm:$0xff] %v2275
        %2301 = vst [vmem:[%s300 + $0x28] sm:$0xff] %v2276
        %2302 = vst [vmem:[%s300 + $0x30] sm:$0xff] %v2277
        %2303 = vst [vmem:[%s300 + $0x38] sm:$0xff] %v2278
        %2304 = vst [vmem:[%s300 + $0x40] sm:$0xff] %v2279
        %2305 = vst [vmem:[%s300 + $0x48] sm:$0xff] %v2280
        %2306 = vst [vmem:[%s300 + $0x50] sm:$0xff] %v2281
        %2307 = vst [vmem:[%s300 + $0x58] sm:$0xff] %v2282
        %2308 = vst [vmem:[%s300 + $0x60] sm:$0xff] %v2283
        %2309 = vst [vmem:[%s300 + $0x68] sm:$0xff] %v2284
        %2310 = vst [vmem:[%s300 + $0x70] sm:$0xff] %v2285
        %2311 = vst [vmem:[%s300 + $0x78] sm:$0xff] %v2286
        %2312 = vst [vmem:[%s300 + $0x80] sm:$0xff] %v2287
        %2313 = vst [vmem:[%s300 + $0x88] sm:$0xff] %v2288
        %2314 = vst [vmem:[%s300 + $0x90] sm:$0xff] %v2289
        %2315 = vst [vmem:[%s300 + $0x98] sm:$0xff] %v2290
        %2316 = vst [vmem:[%s300 + $0xa0] sm:$0xff] %v2291
        %2317 = vst [vmem:[%s300 + $0xa8] sm:$0xff] %v2292
        %2318 = vst [vmem:[%s300 + $0xb0] sm:$0xff] %v2293
        %2319 = vst [vmem:[%s300 + $0xb8] sm:$0xff] %v2294
        %2320 = vst [vmem:[%s300 + $0xc0] sm:$0xf] %v2295
        %s2321 = sand.u32 %s132, 1
        %s2322 = scalar_lea.sflag [#allocation4], %s2321
        %s2323 = sand.u32 %s132, 1
        %s2324 = smul.addr %s2323, 200
        %s2325 = scalar_lea.vmem [#allocation10], %s2324
        // Predicated region
        $region53: #{tpu_custom_call.1} parent=35 // pred_check
          %p2326 = pneg %p142
        $region54: #{tpu_custom_call.1} parent=35 // pred_check_branch
          %2328 = sbr.rel (%p2326) target = $region56
        $region55: #{tpu_custom_call.1} parent=35 // pred_region
          %2330 = vsyncadd %s2322, 0
          %s2331 = smul.addr %s25, 8
          %s2332 = scalar_lea.hbm %s4, %s2331
          %s2333 = sshll.u32 %s2325, 4
          %s2334 = int_to_ptr.vmem [resolvable:$true] %s2333
          %s2335 = sshll.u32 %s2332, 4
          %s2336 = int_to_ptr.hbm [resolvable:$true] %s2335
          %2341 = dma.vmem_to_hbm [thread:$0]  %s2334, 3200, %s2336, %s2322, 128, 1408, 8
        $region56: #{tpu_custom_call.1} parent=35 // pred_fallthru
          _
      $region36: #{tpu_custom_call.1} parent=5 // pred_fallthru
        _
      %p2342 = scmp.le.s32.totalorder 2, %s20
      // Predicated region
      $region57: #{tpu_custom_call.1} parent=5 // pred_check
        %p2343 = pneg %p2342
      $region58: #{tpu_custom_call.1} parent=5 // pred_check_branch
        %2345 = sbr.rel (%p2343) target = $region60
      $region59: #{tpu_custom_call.1} parent=5 // pred_region
        %s2346 = ssub.s32 %s20, 2
        // Predicated region
        $region61: #{tpu_custom_call.1} parent=59 // pred_check
          %p2347 = pneg %p148
        $region62: #{tpu_custom_call.1} parent=59 // pred_check_branch
          %2349 = sbr.rel (%p2347) target = $region64
        $region63: #{tpu_custom_call.1} parent=59 // pred_region
          %s2350 = sand.u32 %s133, 1
          %s2351 = scalar_lea.sflag [#allocation4], %s2350
          %s2352 = sand.u32 %s133, 1
          %s2353 = smul.addr %s2352, 200
          %s2354 = scalar_lea.vmem [#allocation10], %s2353
          %2356 = dma.done %s2351, 3200
        $region64: #{tpu_custom_call.1} parent=59 // pred_fallthru
          _
      $region60: #{tpu_custom_call.1} parent=5 // pred_fallthru
        _
    $region6: #{tpu_custom_call.1} parent=1 // loop_footer
      %s24 = sadd.s32 1, %s20
    $region7: #{tpu_custom_call.1} parent=1 // loop_footer_branch
      %19 = sbr.rel target = $region3
    $region8: #{tpu_custom_call.1} parent=1 // loop_exit
      _
    %2357 = vsyncpa [#allocation3], 1
    %s2358 = scalar_lea.sflag [#allocation3], 1
    %2359 = vsyncpa %s2358, 1
    %2360 = vsyncpa [#allocation6], 1
    %s2361 = scalar_lea.sflag [#allocation6], 1
    %2362 = vsyncpa %s2361, 1
    %2363 = vsyncpa [#allocation9], 1
    %s2364 = scalar_lea.sflag [#allocation9], 1
    %2365 = vsyncpa %s2364, 1
    %2366 = vsyncpa [#allocation4], 1
    %s2367 = scalar_lea.sflag [#allocation4], 1
    %2368 = vsyncpa %s2367, 1

</llo_original>
